<compile_context>
chip_gen: v7x
topology: tpu7x:2x2x1
jax: 0.10.0
libtpu: 0.0.40
codegen_flags: <defaults>
</compile_context>

<pallas_src>
import jax
import jax.numpy as jnp
from jax.experimental import pallas as pl
from jax.experimental.pallas import tpu as pltpu

GATE_PAD = 128        # each gate block padded to a full 128-lane tile
OUT_PAD = 128         # FC output lane-padded for a lane-dense store
BATCH_PAD = 8         # batch padded to a multiple of one sublane tile
SIGMOID_GATES = (0, 1, 3)   # PyTorch gate order [i, f, g, o] -> i, f, o use sigmoid


def lstm_fc_kernel(x_ref, wih_ref, whh_ref, b_ref, wfc_ref, bfc_ref,
                   out_ref, pre_ref):
    """Full LSTM recurrence + final FC, fully unrolled, all-VMEM.

    x_ref   : (T*Bp, I)        time-major, batch-padded, flattened input
    wih_ref : (I, 4*Hp)        input->gates weights (gate blocks lane padded;
                               i/f/o columns pre-scaled by 0.5)
    whh_ref : (Hp, 4*Hp)       hidden->gates weights (rows >= H are zero;
                               i/f/o columns pre-scaled by 0.5)
    b_ref   : (1, 4*Hp)        bias_ih + bias_hh (padded, i/f/o pre-scaled)
    wfc_ref : (Hp, Op)         fc weight (rows >= H zero, cols >= O zero)
    bfc_ref : (1, Op)          fc bias (cols >= O zero)
    out_ref : (Bp, Op)         fc(h_T), padded; wrapper slices [:B, :O]
    pre_ref : ((T-2)*Bp, 4*Hp) VMEM scratch for the hoisted input projection
                               of steps 2..T-1
    """
    TB = x_ref.shape[0]
    Hp = whh_ref.shape[0]
    Bp = out_ref.shape[0]
    T = TB // Bp

    def sig(y):
        # sigmoid(x) == 0.5 * tanh(x / 2) + 0.5 ; the 0.5 input scale is
        # already folded into the i/f/o weight/bias columns, so this is a
        # single EUP tanh plus one VPU FMA.
        return 0.5 * jnp.tanh(y) + 0.5

    def split_gates(g):
        return (g[:, 0 * Hp:1 * Hp], g[:, 1 * Hp:2 * Hp],
                g[:, 2 * Hp:3 * Hp], g[:, 3 * Hp:4 * Hp])

    # ---- Step 0 (peeled): h = c = 0, so gates = x_0 @ W_ih + b.
    #      No h@W_hh matmul and no f*c term on the serial chain.
    pre0 = (jnp.dot(x_ref[pl.ds(0, Bp), :], wih_ref[...],
                    preferred_element_type=jnp.float32) + b_ref[...])
    gi, _, gg, go = split_gates(pre0)
    c = sig(gi) * jnp.tanh(gg)
    h = sig(go) * jnp.tanh(c)

    pre1 = None
    if T >= 2:
        # Step-1 pre-gates as a value: keeps step 1 off the big scratch store.
        pre1 = (jnp.dot(x_ref[pl.ds(Bp, Bp), :], wih_ref[...],
                        preferred_element_type=jnp.float32) + b_ref[...])

    if T >= 3:
        # Hoisted input projection for steps 2..T-1: one MXU call, independent
        # of h/c, overlapped by the scheduler with the early recurrence steps.
        pre_ref[...] = (jnp.dot(x_ref[pl.ds(2 * Bp, (T - 2) * Bp), :],
                                wih_ref[...],
                                preferred_element_type=jnp.float32)
                        + b_ref[...])

    # ---- Steps 1..T-1 (fully unrolled; T is a static Python int).
    #      NOTE: keeping W_hh resident in the MXU across steps via the explicit
    #      matmul_push_rhs/acc_lhs/pop API is a further (chip-specific) win;
    #      jnp.dot is kept here for portability/correctness.
    for t in range(1, T):
        pre_t = pre1 if t == 1 else pre_ref[pl.ds((t - 2) * Bp, Bp), :]
        gates = pre_t + jnp.dot(h, whh_ref[...],
                                preferred_element_type=jnp.float32)
        gi, gf, gg, go = split_gates(gates)
        c = sig(gf) * c + sig(gi) * jnp.tanh(gg)
        h = sig(go) * jnp.tanh(c)

    # Final FC on the last hidden state; lane-dense (Bp, 128) store.
    out_ref[...] = (jnp.dot(h, wfc_ref[...], preferred_element_type=jnp.float32)
                    + bfc_ref[...]).astype(out_ref.dtype)


def prepare_params(w_ih, w_hh, b_ih, b_hh, w_fc, b_fc,
                   hp=GATE_PAD, op=OUT_PAD):
    """One-time weight prep: transpose, gate-block lane padding, bias fusion,
    and folding of the 0.5 sigmoid input scale into the i/f/o gate columns.

    PyTorch shapes: w_ih (4H, I), w_hh (4H, H), b_* (4H,), w_fc (O, H), b_fc (O,)
    Gate order is PyTorch's [i, f, g, o]. Padded rows/cols stay exactly zero.
    """
    H = w_hh.shape[1]
    O = w_fc.shape[0]

    def pad_scale_gate_cols(w):  # (rows, 4H) -> (rows, 4*hp)
        rows = w.shape[0]
        out = jnp.zeros((rows, 4 * hp), jnp.float32)
        for k in range(4):
            blk = w[:, k * H:(k + 1) * H].astype(jnp.float32)
            if k in SIGMOID_GATES:
                blk = blk * 0.5          # fold sigmoid's x/2 into the weights
            out = out.at[:, k * hp:k * hp + H].set(blk)
        return out

    wih_p = pad_scale_gate_cols(jnp.transpose(w_ih))                 # (I, 4Hp)
    whh_p = jnp.zeros((hp, 4 * hp), jnp.float32).at[:H, :].set(
        pad_scale_gate_cols(jnp.transpose(w_hh)))                    # (Hp, 4Hp)
    b_p = pad_scale_gate_cols((b_ih + b_hh).reshape(1, 4 * H))       # (1, 4Hp)
    wfc_p = jnp.zeros((hp, op), jnp.float32).at[:H, :O].set(
        jnp.transpose(w_fc).astype(jnp.float32))                     # (Hp, Op)
    bfc_p = jnp.zeros((1, op), jnp.float32).at[:, :O].set(
        b_fc.reshape(1, O).astype(jnp.float32))                      # (1, Op)
    return wih_p, whh_p, b_p, wfc_p, bfc_p, O


def _forward_impl(x_btI, wih_p, whh_p, b_p, wfc_p, bfc_p, out_size):
    """x_btI: (B, T, I) PyTorch batch_first input."""
    B, T, I = x_btI.shape
    Bp = max(BATCH_PAD, ((B + 7) // 8) * 8)
    Hp = whh_p.shape[0]
    Op = wfc_p.shape[1]

    # Per-call x prep only: time-major, batch-pad, flatten. transpose + pad +
    # reshape fuse into the operand copy; no zeros().at[].set() materialization.
    x_tbi = jnp.transpose(x_btI.astype(jnp.float32), (1, 0, 2))      # (T, B, I)
    x_flat = jnp.pad(x_tbi, ((0, 0), (0, Bp - B), (0, 0))).reshape(T * Bp, I)

    n_scratch_rows = max(T - 2, 1) * Bp
    vmem = pl.BlockSpec(memory_space=pltpu.MemorySpace.VMEM)
    out_p = pl.pallas_call(
        lstm_fc_kernel,
        out_shape=jax.ShapeDtypeStruct((Bp, Op), jnp.float32),
        in_specs=[vmem] * 6,
        out_specs=vmem,
        scratch_shapes=[pltpu.VMEM((n_scratch_rows, 4 * Hp), jnp.float32)],
    )(x_flat, wih_p, whh_p, b_p, wfc_p, bfc_p)

    return out_p[:B, :out_size]


lstm_model_forward = jax.jit(_forward_impl, static_argnums=(6,))


def _reference(x, w_ih, w_hh, b_ih, b_hh, w_fc, b_fc):
    """Pure-JAX reference matching PyTorch nn.LSTM + Linear semantics."""
    B, T, I = x.shape
    H = w_hh.shape[1]
    h = jnp.zeros((B, H), jnp.float32)
    c = jnp.zeros((B, H), jnp.float32)
    for t in range(T):
        gates = x[:, t, :] @ w_ih.T + b_ih + h @ w_hh.T + b_hh
        i_g = jax.nn.sigmoid(gates[:, 0 * H:1 * H])
        f_g = jax.nn.sigmoid(gates[:, 1 * H:2 * H])
        g_g = jnp.tanh(gates[:, 2 * H:3 * H])
        o_g = jax.nn.sigmoid(gates[:, 3 * H:4 * H])
        c = f_g * c + i_g * g_g
        h = o_g * jnp.tanh(c)
    return h @ w_fc.T + b_fc


if __name__ == "__main__":
    input_size = 19
    hidden_size = 50
    output_size = 24
    batch = 2
    seq = 8

    key = jax.random.PRNGKey(0)
    ks = jax.random.split(key, 7)
    scale = 1.0 / jnp.sqrt(hidden_size)

    x = jax.random.normal(ks[0], (batch, seq, input_size), jnp.float32)
    w_ih = jax.random.uniform(ks[1], (4 * hidden_size, input_size), jnp.float32,
                              -scale, scale)
    w_hh = jax.random.uniform(ks[2], (4 * hidden_size, hidden_size), jnp.float32,
                              -scale, scale)
    b_ih = jax.random.uniform(ks[3], (4 * hidden_size,), jnp.float32, -scale, scale)
    b_hh = jax.random.uniform(ks[4], (4 * hidden_size,), jnp.float32, -scale, scale)
    w_fc = jax.random.uniform(ks[5], (output_size, hidden_size), jnp.float32,
                              -scale, scale)
    b_fc = jax.random.uniform(ks[6], (output_size,), jnp.float32, -scale, scale)

    # One-time parameter prep (transposes / padding / bias fusion / 0.5 fold).
    wih_p, whh_p, b_p, wfc_p, bfc_p, O = prepare_params(
        w_ih, w_hh, b_ih, b_hh, w_fc, b_fc)

    out = lstm_model_forward(x, wih_p, whh_p, b_p, wfc_p, bfc_p, O)
    out = jax.block_until_ready(out)

    ref = _reference(x, w_ih, w_hh, b_ih, b_hh, w_fc, b_fc)
    assert out.shape == (batch, output_size)
    assert jnp.allclose(out, ref, rtol=1e-4, atol=1e-4), "mismatch vs reference"

    print("KERNEL_OK")
</pallas_src>

<mosaic_0001>
module attributes {stable_mosaic.version = 11 : i64} {
  func.func @lstm_fc_kernel(%arg0: memref<64x19xf32, #tpu.memory_space<vmem>>, %arg1: memref<19x512xf32, #tpu.memory_space<vmem>>, %arg2: memref<128x512xf32, #tpu.memory_space<vmem>>, %arg3: memref<1x512xf32, #tpu.memory_space<vmem>>, %arg4: memref<128x128xf32, #tpu.memory_space<vmem>>, %arg5: memref<1x128xf32, #tpu.memory_space<vmem>>, %arg6: memref<8x128xf32, #tpu.memory_space<vmem>>, %arg7: memref<48x512xf32, #tpu.memory_space<vmem>>) attributes {dimension_semantics = [], scalar_prefetch = 0 : i64, scratch_operands = 1 : i64, tpu.core_type = #tpu.core_type<tc>} {
    %c0 = arith.constant 0 : index
    %c0_0 = arith.constant 0 : index
    %0 = vector.load %arg0[%c0, %c0_0] : memref<64x19xf32, #tpu.memory_space<vmem>>, vector<8x19xf32>
    %c0_1 = arith.constant 0 : index
    %c0_2 = arith.constant 0 : index
    %1 = vector.load %arg1[%c0_1, %c0_2] : memref<19x512xf32, #tpu.memory_space<vmem>>, vector<19x512xf32>
    %cst = arith.constant dense<0.000000e+00> : vector<8x512xf32>
    %2 = tpu.matmul %0, %1, %cst {dimension_numbers = #tpu.dot_dimension_numbers<[1], [0], [0], [1], [0, 0, 1, 1], [], []>} : vector<8x19xf32>, vector<19x512xf32>, vector<8x512xf32> -> vector<8x512xf32>
    %c0_3 = arith.constant 0 : index
    %c0_4 = arith.constant 0 : index
    %3 = vector.load %arg3[%c0_3, %c0_4] : memref<1x512xf32, #tpu.memory_space<vmem>>, vector<1x512xf32>
    %4 = vector.broadcast %3 : vector<1x512xf32> to vector<8x512xf32>
    %5 = arith.addf %2, %4 : vector<8x512xf32>
    %6 = vector.extract_strided_slice %5 {offsets = [0, 0], sizes = [8, 128], strides = [1, 1]} : vector<8x512xf32> to vector<8x128xf32>
    %7 = vector.extract_strided_slice %5 {offsets = [0, 256], sizes = [8, 128], strides = [1, 1]} : vector<8x512xf32> to vector<8x128xf32>
    %8 = vector.extract_strided_slice %5 {offsets = [0, 384], sizes = [8, 128], strides = [1, 1]} : vector<8x512xf32> to vector<8x128xf32>
    %9 = math.tanh %6 : vector<8x128xf32>
    %cst_5 = arith.constant 5.000000e-01 : f32
    %10 = vector.broadcast %cst_5 : f32 to vector<8x128xf32>
    %11 = arith.mulf %10, %9 : vector<8x128xf32>
    %cst_6 = arith.constant 5.000000e-01 : f32
    %12 = vector.broadcast %cst_6 : f32 to vector<8x128xf32>
    %13 = arith.addf %11, %12 : vector<8x128xf32>
    %14 = math.tanh %7 : vector<8x128xf32>
    %15 = arith.mulf %13, %14 : vector<8x128xf32>
    %16 = math.tanh %8 : vector<8x128xf32>
    %cst_7 = arith.constant 5.000000e-01 : f32
    %17 = vector.broadcast %cst_7 : f32 to vector<8x128xf32>
    %18 = arith.mulf %17, %16 : vector<8x128xf32>
    %cst_8 = arith.constant 5.000000e-01 : f32
    %19 = vector.broadcast %cst_8 : f32 to vector<8x128xf32>
    %20 = arith.addf %18, %19 : vector<8x128xf32>
    %21 = math.tanh %15 : vector<8x128xf32>
    %22 = arith.mulf %20, %21 : vector<8x128xf32>
    %c8 = arith.constant 8 : index
    %c0_9 = arith.constant 0 : index
    %23 = vector.load %arg0[%c8, %c0_9] : memref<64x19xf32, #tpu.memory_space<vmem>>, vector<8x19xf32>
    %c0_10 = arith.constant 0 : index
    %c0_11 = arith.constant 0 : index
    %24 = vector.load %arg1[%c0_10, %c0_11] : memref<19x512xf32, #tpu.memory_space<vmem>>, vector<19x512xf32>
    %cst_12 = arith.constant dense<0.000000e+00> : vector<8x512xf32>
    %25 = tpu.matmul %23, %24, %cst_12 {dimension_numbers = #tpu.dot_dimension_numbers<[1], [0], [0], [1], [0, 0, 1, 1], [], []>} : vector<8x19xf32>, vector<19x512xf32>, vector<8x512xf32> -> vector<8x512xf32>
    %c0_13 = arith.constant 0 : index
    %c0_14 = arith.constant 0 : index
    %26 = vector.load %arg3[%c0_13, %c0_14] : memref<1x512xf32, #tpu.memory_space<vmem>>, vector<1x512xf32>
    %27 = vector.broadcast %26 : vector<1x512xf32> to vector<8x512xf32>
    %28 = arith.addf %25, %27 : vector<8x512xf32>
    %c16 = arith.constant 16 : index
    %c0_15 = arith.constant 0 : index
    %29 = vector.load %arg0[%c16, %c0_15] : memref<64x19xf32, #tpu.memory_space<vmem>>, vector<48x19xf32>
    %c0_16 = arith.constant 0 : index
    %c0_17 = arith.constant 0 : index
    %30 = vector.load %arg1[%c0_16, %c0_17] : memref<19x512xf32, #tpu.memory_space<vmem>>, vector<19x512xf32>
    %cst_18 = arith.constant dense<0.000000e+00> : vector<48x512xf32>
    %31 = tpu.matmul %29, %30, %cst_18 {dimension_numbers = #tpu.dot_dimension_numbers<[1], [0], [0], [1], [0, 0, 1, 1], [], []>} : vector<48x19xf32>, vector<19x512xf32>, vector<48x512xf32> -> vector<48x512xf32>
    %c0_19 = arith.constant 0 : index
    %c0_20 = arith.constant 0 : index
    %32 = vector.load %arg3[%c0_19, %c0_20] : memref<1x512xf32, #tpu.memory_space<vmem>>, vector<1x512xf32>
    %33 = vector.broadcast %32 : vector<1x512xf32> to vector<48x512xf32>
    %34 = arith.addf %31, %33 : vector<48x512xf32>
    %c0_21 = arith.constant 0 : index
    %c0_22 = arith.constant 0 : index
    %35 = vector.load %arg7[%c0_21, %c0_22] : memref<48x512xf32, #tpu.memory_space<vmem>>, vector<48x512xf32>
    tpu.vector_store %arg7[%c0_21, %c0_22], %34 {strides = array<i32>} : memref<48x512xf32, #tpu.memory_space<vmem>>, vector<48x512xf32>,
    %c0_23 = arith.constant 0 : index
    %c0_24 = arith.constant 0 : index
    %36 = vector.load %arg2[%c0_23, %c0_24] : memref<128x512xf32, #tpu.memory_space<vmem>>, vector<128x512xf32>
    %cst_25 = arith.constant dense<0.000000e+00> : vector<8x512xf32>
    %37 = tpu.matmul %22, %36, %cst_25 {dimension_numbers = #tpu.dot_dimension_numbers<[1], [0], [0], [1], [0, 0, 1, 1], [], []>} : vector<8x128xf32>, vector<128x512xf32>, vector<8x512xf32> -> vector<8x512xf32>
    %38 = arith.addf %28, %37 : vector<8x512xf32>
    %39 = vector.extract_strided_slice %38 {offsets = [0, 0], sizes = [8, 128], strides = [1, 1]} : vector<8x512xf32> to vector<8x128xf32>
    %40 = vector.extract_strided_slice %38 {offsets = [0, 128], sizes = [8, 128], strides = [1, 1]} : vector<8x512xf32> to vector<8x128xf32>
    %41 = vector.extract_strided_slice %38 {offsets = [0, 256], sizes = [8, 128], strides = [1, 1]} : vector<8x512xf32> to vector<8x128xf32>
    %42 = vector.extract_strided_slice %38 {offsets = [0, 384], sizes = [8, 128], strides = [1, 1]} : vector<8x512xf32> to vector<8x128xf32>
    %43 = math.tanh %40 : vector<8x128xf32>
    %cst_26 = arith.constant 5.000000e-01 : f32
    %44 = vector.broadcast %cst_26 : f32 to vector<8x128xf32>
    %45 = arith.mulf %44, %43 : vector<8x128xf32>
    %cst_27 = arith.constant 5.000000e-01 : f32
    %46 = vector.broadcast %cst_27 : f32 to vector<8x128xf32>
    %47 = arith.addf %45, %46 : vector<8x128xf32>
    %48 = arith.mulf %47, %15 : vector<8x128xf32>
    %49 = math.tanh %39 : vector<8x128xf32>
    %cst_28 = arith.constant 5.000000e-01 : f32
    %50 = vector.broadcast %cst_28 : f32 to vector<8x128xf32>
    %51 = arith.mulf %50, %49 : vector<8x128xf32>
    %cst_29 = arith.constant 5.000000e-01 : f32
    %52 = vector.broadcast %cst_29 : f32 to vector<8x128xf32>
    %53 = arith.addf %51, %52 : vector<8x128xf32>
    %54 = math.tanh %41 : vector<8x128xf32>
    %55 = arith.mulf %53, %54 : vector<8x128xf32>
    %56 = arith.addf %48, %55 : vector<8x128xf32>
    %57 = math.tanh %42 : vector<8x128xf32>
    %cst_30 = arith.constant 5.000000e-01 : f32
    %58 = vector.broadcast %cst_30 : f32 to vector<8x128xf32>
    %59 = arith.mulf %58, %57 : vector<8x128xf32>
    %cst_31 = arith.constant 5.000000e-01 : f32
    %60 = vector.broadcast %cst_31 : f32 to vector<8x128xf32>
    %61 = arith.addf %59, %60 : vector<8x128xf32>
    %62 = math.tanh %56 : vector<8x128xf32>
    %63 = arith.mulf %61, %62 : vector<8x128xf32>
    %c0_32 = arith.constant 0 : index
    %c0_33 = arith.constant 0 : index
    %64 = vector.load %arg7[%c0_32, %c0_33] : memref<48x512xf32, #tpu.memory_space<vmem>>, vector<8x512xf32>
    %c0_34 = arith.constant 0 : index
    %c0_35 = arith.constant 0 : index
    %65 = vector.load %arg2[%c0_34, %c0_35] : memref<128x512xf32, #tpu.memory_space<vmem>>, vector<128x512xf32>
    %cst_36 = arith.constant dense<0.000000e+00> : vector<8x512xf32>
    %66 = tpu.matmul %63, %65, %cst_36 {dimension_numbers = #tpu.dot_dimension_numbers<[1], [0], [0], [1], [0, 0, 1, 1], [], []>} : vector<8x128xf32>, vector<128x512xf32>, vector<8x512xf32> -> vector<8x512xf32>
    %67 = arith.addf %64, %66 : vector<8x512xf32>
    %68 = vector.extract_strided_slice %67 {offsets = [0, 0], sizes = [8, 128], strides = [1, 1]} : vector<8x512xf32> to vector<8x128xf32>
    %69 = vector.extract_strided_slice %67 {offsets = [0, 128], sizes = [8, 128], strides = [1, 1]} : vector<8x512xf32> to vector<8x128xf32>
    %70 = vector.extract_strided_slice %67 {offsets = [0, 256], sizes = [8, 128], strides = [1, 1]} : vector<8x512xf32> to vector<8x128xf32>
    %71 = vector.extract_strided_slice %67 {offsets = [0, 384], sizes = [8, 128], strides = [1, 1]} : vector<8x512xf32> to vector<8x128xf32>
    %72 = math.tanh %69 : vector<8x128xf32>
    %cst_37 = arith.constant 5.000000e-01 : f32
    %73 = vector.broadcast %cst_37 : f32 to vector<8x128xf32>
    %74 = arith.mulf %73, %72 : vector<8x128xf32>
    %cst_38 = arith.constant 5.000000e-01 : f32
    %75 = vector.broadcast %cst_38 : f32 to vector<8x128xf32>
    %76 = arith.addf %74, %75 : vector<8x128xf32>
    %77 = arith.mulf %76, %56 : vector<8x128xf32>
    %78 = math.tanh %68 : vector<8x128xf32>
    %cst_39 = arith.constant 5.000000e-01 : f32
    %79 = vector.broadcast %cst_39 : f32 to vector<8x128xf32>
    %80 = arith.mulf %79, %78 : vector<8x128xf32>
    %cst_40 = arith.constant 5.000000e-01 : f32
    %81 = vector.broadcast %cst_40 : f32 to vector<8x128xf32>
    %82 = arith.addf %80, %81 : vector<8x128xf32>
    %83 = math.tanh %70 : vector<8x128xf32>
    %84 = arith.mulf %82, %83 : vector<8x128xf32>
    %85 = arith.addf %77, %84 : vector<8x128xf32>
    %86 = math.tanh %71 : vector<8x128xf32>
    %cst_41 = arith.constant 5.000000e-01 : f32
    %87 = vector.broadcast %cst_41 : f32 to vector<8x128xf32>
    %88 = arith.mulf %87, %86 : vector<8x128xf32>
    %cst_42 = arith.constant 5.000000e-01 : f32
    %89 = vector.broadcast %cst_42 : f32 to vector<8x128xf32>
    %90 = arith.addf %88, %89 : vector<8x128xf32>
    %91 = math.tanh %85 : vector<8x128xf32>
    %92 = arith.mulf %90, %91 : vector<8x128xf32>
    %c8_43 = arith.constant 8 : index
    %c0_44 = arith.constant 0 : index
    %93 = vector.load %arg7[%c8_43, %c0_44] : memref<48x512xf32, #tpu.memory_space<vmem>>, vector<8x512xf32>
    %c0_45 = arith.constant 0 : index
    %c0_46 = arith.constant 0 : index
    %94 = vector.load %arg2[%c0_45, %c0_46] : memref<128x512xf32, #tpu.memory_space<vmem>>, vector<128x512xf32>
    %cst_47 = arith.constant dense<0.000000e+00> : vector<8x512xf32>
    %95 = tpu.matmul %92, %94, %cst_47 {dimension_numbers = #tpu.dot_dimension_numbers<[1], [0], [0], [1], [0, 0, 1, 1], [], []>} : vector<8x128xf32>, vector<128x512xf32>, vector<8x512xf32> -> vector<8x512xf32>
    %96 = arith.addf %93, %95 : vector<8x512xf32>
    %97 = vector.extract_strided_slice %96 {offsets = [0, 0], sizes = [8, 128], strides = [1, 1]} : vector<8x512xf32> to vector<8x128xf32>
    %98 = vector.extract_strided_slice %96 {offsets = [0, 128], sizes = [8, 128], strides = [1, 1]} : vector<8x512xf32> to vector<8x128xf32>
    %99 = vector.extract_strided_slice %96 {offsets = [0, 256], sizes = [8, 128], strides = [1, 1]} : vector<8x512xf32> to vector<8x128xf32>
    %100 = vector.extract_strided_slice %96 {offsets = [0, 384], sizes = [8, 128], strides = [1, 1]} : vector<8x512xf32> to vector<8x128xf32>
    %101 = math.tanh %98 : vector<8x128xf32>
    %cst_48 = arith.constant 5.000000e-01 : f32
    %102 = vector.broadcast %cst_48 : f32 to vector<8x128xf32>
    %103 = arith.mulf %102, %101 : vector<8x128xf32>
    %cst_49 = arith.constant 5.000000e-01 : f32
    %104 = vector.broadcast %cst_49 : f32 to vector<8x128xf32>
    %105 = arith.addf %103, %104 : vector<8x128xf32>
    %106 = arith.mulf %105, %85 : vector<8x128xf32>
    %107 = math.tanh %97 : vector<8x128xf32>
    %cst_50 = arith.constant 5.000000e-01 : f32
    %108 = vector.broadcast %cst_50 : f32 to vector<8x128xf32>
    %109 = arith.mulf %108, %107 : vector<8x128xf32>
    %cst_51 = arith.constant 5.000000e-01 : f32
    %110 = vector.broadcast %cst_51 : f32 to vector<8x128xf32>
    %111 = arith.addf %109, %110 : vector<8x128xf32>
    %112 = math.tanh %99 : vector<8x128xf32>
    %113 = arith.mulf %111, %112 : vector<8x128xf32>
    %114 = arith.addf %106, %113 : vector<8x128xf32>
    %115 = math.tanh %100 : vector<8x128xf32>
    %cst_52 = arith.constant 5.000000e-01 : f32
    %116 = vector.broadcast %cst_52 : f32 to vector<8x128xf32>
    %117 = arith.mulf %116, %115 : vector<8x128xf32>
    %cst_53 = arith.constant 5.000000e-01 : f32
    %118 = vector.broadcast %cst_53 : f32 to vector<8x128xf32>
    %119 = arith.addf %117, %118 : vector<8x128xf32>
    %120 = math.tanh %114 : vector<8x128xf32>
    %121 = arith.mulf %119, %120 : vector<8x128xf32>
    %c16_54 = arith.constant 16 : index
    %c0_55 = arith.constant 0 : index
    %122 = vector.load %arg7[%c16_54, %c0_55] : memref<48x512xf32, #tpu.memory_space<vmem>>, vector<8x512xf32>
    %c0_56 = arith.constant 0 : index
    %c0_57 = arith.constant 0 : index
    %123 = vector.load %arg2[%c0_56, %c0_57] : memref<128x512xf32, #tpu.memory_space<vmem>>, vector<128x512xf32>
    %cst_58 = arith.constant dense<0.000000e+00> : vector<8x512xf32>
    %124 = tpu.matmul %121, %123, %cst_58 {dimension_numbers = #tpu.dot_dimension_numbers<[1], [0], [0], [1], [0, 0, 1, 1], [], []>} : vector<8x128xf32>, vector<128x512xf32>, vector<8x512xf32> -> vector<8x512xf32>
    %125 = arith.addf %122, %124 : vector<8x512xf32>
    %126 = vector.extract_strided_slice %125 {offsets = [0, 0], sizes = [8, 128], strides = [1, 1]} : vector<8x512xf32> to vector<8x128xf32>
    %127 = vector.extract_strided_slice %125 {offsets = [0, 128], sizes = [8, 128], strides = [1, 1]} : vector<8x512xf32> to vector<8x128xf32>
    %128 = vector.extract_strided_slice %125 {offsets = [0, 256], sizes = [8, 128], strides = [1, 1]} : vector<8x512xf32> to vector<8x128xf32>
    %129 = vector.extract_strided_slice %125 {offsets = [0, 384], sizes = [8, 128], strides = [1, 1]} : vector<8x512xf32> to vector<8x128xf32>
    %130 = math.tanh %127 : vector<8x128xf32>
    %cst_59 = arith.constant 5.000000e-01 : f32
    %131 = vector.broadcast %cst_59 : f32 to vector<8x128xf32>
    %132 = arith.mulf %131, %130 : vector<8x128xf32>
    %cst_60 = arith.constant 5.000000e-01 : f32
    %133 = vector.broadcast %cst_60 : f32 to vector<8x128xf32>
    %134 = arith.addf %132, %133 : vector<8x128xf32>
    %135 = arith.mulf %134, %114 : vector<8x128xf32>
    %136 = math.tanh %126 : vector<8x128xf32>
    %cst_61 = arith.constant 5.000000e-01 : f32
    %137 = vector.broadcast %cst_61 : f32 to vector<8x128xf32>
    %138 = arith.mulf %137, %136 : vector<8x128xf32>
    %cst_62 = arith.constant 5.000000e-01 : f32
    %139 = vector.broadcast %cst_62 : f32 to vector<8x128xf32>
    %140 = arith.addf %138, %139 : vector<8x128xf32>
    %141 = math.tanh %128 : vector<8x128xf32>
    %142 = arith.mulf %140, %141 : vector<8x128xf32>
    %143 = arith.addf %135, %142 : vector<8x128xf32>
    %144 = math.tanh %129 : vector<8x128xf32>
    %cst_63 = arith.constant 5.000000e-01 : f32
    %145 = vector.broadcast %cst_63 : f32 to vector<8x128xf32>
    %146 = arith.mulf %145, %144 : vector<8x128xf32>
    %cst_64 = arith.constant 5.000000e-01 : f32
    %147 = vector.broadcast %cst_64 : f32 to vector<8x128xf32>
    %148 = arith.addf %146, %147 : vector<8x128xf32>
    %149 = math.tanh %143 : vector<8x128xf32>
    %150 = arith.mulf %148, %149 : vector<8x128xf32>
    %c24 = arith.constant 24 : index
    %c0_65 = arith.constant 0 : index
    %151 = vector.load %arg7[%c24, %c0_65] : memref<48x512xf32, #tpu.memory_space<vmem>>, vector<8x512xf32>
    %c0_66 = arith.constant 0 : index
    %c0_67 = arith.constant 0 : index
    %152 = vector.load %arg2[%c0_66, %c0_67] : memref<128x512xf32, #tpu.memory_space<vmem>>, vector<128x512xf32>
    %cst_68 = arith.constant dense<0.000000e+00> : vector<8x512xf32>
    %153 = tpu.matmul %150, %152, %cst_68 {dimension_numbers = #tpu.dot_dimension_numbers<[1], [0], [0], [1], [0, 0, 1, 1], [], []>} : vector<8x128xf32>, vector<128x512xf32>, vector<8x512xf32> -> vector<8x512xf32>
    %154 = arith.addf %151, %153 : vector<8x512xf32>
    %155 = vector.extract_strided_slice %154 {offsets = [0, 0], sizes = [8, 128], strides = [1, 1]} : vector<8x512xf32> to vector<8x128xf32>
    %156 = vector.extract_strided_slice %154 {offsets = [0, 128], sizes = [8, 128], strides = [1, 1]} : vector<8x512xf32> to vector<8x128xf32>
    %157 = vector.extract_strided_slice %154 {offsets = [0, 256], sizes = [8, 128], strides = [1, 1]} : vector<8x512xf32> to vector<8x128xf32>
    %158 = vector.extract_strided_slice %154 {offsets = [0, 384], sizes = [8, 128], strides = [1, 1]} : vector<8x512xf32> to vector<8x128xf32>
    %159 = math.tanh %156 : vector<8x128xf32>
    %cst_69 = arith.constant 5.000000e-01 : f32
    %160 = vector.broadcast %cst_69 : f32 to vector<8x128xf32>
    %161 = arith.mulf %160, %159 : vector<8x128xf32>
    %cst_70 = arith.constant 5.000000e-01 : f32
    %162 = vector.broadcast %cst_70 : f32 to vector<8x128xf32>
    %163 = arith.addf %161, %162 : vector<8x128xf32>
    %164 = arith.mulf %163, %143 : vector<8x128xf32>
    %165 = math.tanh %155 : vector<8x128xf32>
    %cst_71 = arith.constant 5.000000e-01 : f32
    %166 = vector.broadcast %cst_71 : f32 to vector<8x128xf32>
    %167 = arith.mulf %166, %165 : vector<8x128xf32>
    %cst_72 = arith.constant 5.000000e-01 : f32
    %168 = vector.broadcast %cst_72 : f32 to vector<8x128xf32>
    %169 = arith.addf %167, %168 : vector<8x128xf32>
    %170 = math.tanh %157 : vector<8x128xf32>
    %171 = arith.mulf %169, %170 : vector<8x128xf32>
    %172 = arith.addf %164, %171 : vector<8x128xf32>
    %173 = math.tanh %158 : vector<8x128xf32>
    %cst_73 = arith.constant 5.000000e-01 : f32
    %174 = vector.broadcast %cst_73 : f32 to vector<8x128xf32>
    %175 = arith.mulf %174, %173 : vector<8x128xf32>
    %cst_74 = arith.constant 5.000000e-01 : f32
    %176 = vector.broadcast %cst_74 : f32 to vector<8x128xf32>
    %177 = arith.addf %175, %176 : vector<8x128xf32>
    %178 = math.tanh %172 : vector<8x128xf32>
    %179 = arith.mulf %177, %178 : vector<8x128xf32>
    %c32 = arith.constant 32 : index
    %c0_75 = arith.constant 0 : index
    %180 = vector.load %arg7[%c32, %c0_75] : memref<48x512xf32, #tpu.memory_space<vmem>>, vector<8x512xf32>
    %c0_76 = arith.constant 0 : index
    %c0_77 = arith.constant 0 : index
    %181 = vector.load %arg2[%c0_76, %c0_77] : memref<128x512xf32, #tpu.memory_space<vmem>>, vector<128x512xf32>
    %cst_78 = arith.constant dense<0.000000e+00> : vector<8x512xf32>
    %182 = tpu.matmul %179, %181, %cst_78 {dimension_numbers = #tpu.dot_dimension_numbers<[1], [0], [0], [1], [0, 0, 1, 1], [], []>} : vector<8x128xf32>, vector<128x512xf32>, vector<8x512xf32> -> vector<8x512xf32>
    %183 = arith.addf %180, %182 : vector<8x512xf32>
    %184 = vector.extract_strided_slice %183 {offsets = [0, 0], sizes = [8, 128], strides = [1, 1]} : vector<8x512xf32> to vector<8x128xf32>
    %185 = vector.extract_strided_slice %183 {offsets = [0, 128], sizes = [8, 128], strides = [1, 1]} : vector<8x512xf32> to vector<8x128xf32>
    %186 = vector.extract_strided_slice %183 {offsets = [0, 256], sizes = [8, 128], strides = [1, 1]} : vector<8x512xf32> to vector<8x128xf32>
    %187 = vector.extract_strided_slice %183 {offsets = [0, 384], sizes = [8, 128], strides = [1, 1]} : vector<8x512xf32> to vector<8x128xf32>
    %188 = math.tanh %185 : vector<8x128xf32>
    %cst_79 = arith.constant 5.000000e-01 : f32
    %189 = vector.broadcast %cst_79 : f32 to vector<8x128xf32>
    %190 = arith.mulf %189, %188 : vector<8x128xf32>
    %cst_80 = arith.constant 5.000000e-01 : f32
    %191 = vector.broadcast %cst_80 : f32 to vector<8x128xf32>
    %192 = arith.addf %190, %191 : vector<8x128xf32>
    %193 = arith.mulf %192, %172 : vector<8x128xf32>
    %194 = math.tanh %184 : vector<8x128xf32>
    %cst_81 = arith.constant 5.000000e-01 : f32
    %195 = vector.broadcast %cst_81 : f32 to vector<8x128xf32>
    %196 = arith.mulf %195, %194 : vector<8x128xf32>
    %cst_82 = arith.constant 5.000000e-01 : f32
    %197 = vector.broadcast %cst_82 : f32 to vector<8x128xf32>
    %198 = arith.addf %196, %197 : vector<8x128xf32>
    %199 = math.tanh %186 : vector<8x128xf32>
    %200 = arith.mulf %198, %199 : vector<8x128xf32>
    %201 = arith.addf %193, %200 : vector<8x128xf32>
    %202 = math.tanh %187 : vector<8x128xf32>
    %cst_83 = arith.constant 5.000000e-01 : f32
    %203 = vector.broadcast %cst_83 : f32 to vector<8x128xf32>
    %204 = arith.mulf %203, %202 : vector<8x128xf32>
    %cst_84 = arith.constant 5.000000e-01 : f32
    %205 = vector.broadcast %cst_84 : f32 to vector<8x128xf32>
    %206 = arith.addf %204, %205 : vector<8x128xf32>
    %207 = math.tanh %201 : vector<8x128xf32>
    %208 = arith.mulf %206, %207 : vector<8x128xf32>
    %c40 = arith.constant 40 : index
    %c0_85 = arith.constant 0 : index
    %209 = vector.load %arg7[%c40, %c0_85] : memref<48x512xf32, #tpu.memory_space<vmem>>, vector<8x512xf32>
    %c0_86 = arith.constant 0 : index
    %c0_87 = arith.constant 0 : index
    %210 = vector.load %arg2[%c0_86, %c0_87] : memref<128x512xf32, #tpu.memory_space<vmem>>, vector<128x512xf32>
    %cst_88 = arith.constant dense<0.000000e+00> : vector<8x512xf32>
    %211 = tpu.matmul %208, %210, %cst_88 {dimension_numbers = #tpu.dot_dimension_numbers<[1], [0], [0], [1], [0, 0, 1, 1], [], []>} : vector<8x128xf32>, vector<128x512xf32>, vector<8x512xf32> -> vector<8x512xf32>
    %212 = arith.addf %209, %211 : vector<8x512xf32>
    %213 = vector.extract_strided_slice %212 {offsets = [0, 0], sizes = [8, 128], strides = [1, 1]} : vector<8x512xf32> to vector<8x128xf32>
    %214 = vector.extract_strided_slice %212 {offsets = [0, 128], sizes = [8, 128], strides = [1, 1]} : vector<8x512xf32> to vector<8x128xf32>
    %215 = vector.extract_strided_slice %212 {offsets = [0, 256], sizes = [8, 128], strides = [1, 1]} : vector<8x512xf32> to vector<8x128xf32>
    %216 = vector.extract_strided_slice %212 {offsets = [0, 384], sizes = [8, 128], strides = [1, 1]} : vector<8x512xf32> to vector<8x128xf32>
    %217 = math.tanh %214 : vector<8x128xf32>
    %cst_89 = arith.constant 5.000000e-01 : f32
    %218 = vector.broadcast %cst_89 : f32 to vector<8x128xf32>
    %219 = arith.mulf %218, %217 : vector<8x128xf32>
    %cst_90 = arith.constant 5.000000e-01 : f32
    %220 = vector.broadcast %cst_90 : f32 to vector<8x128xf32>
    %221 = arith.addf %219, %220 : vector<8x128xf32>
    %222 = arith.mulf %221, %201 : vector<8x128xf32>
    %223 = math.tanh %213 : vector<8x128xf32>
    %cst_91 = arith.constant 5.000000e-01 : f32
    %224 = vector.broadcast %cst_91 : f32 to vector<8x128xf32>
    %225 = arith.mulf %224, %223 : vector<8x128xf32>
    %cst_92 = arith.constant 5.000000e-01 : f32
    %226 = vector.broadcast %cst_92 : f32 to vector<8x128xf32>
    %227 = arith.addf %225, %226 : vector<8x128xf32>
    %228 = math.tanh %215 : vector<8x128xf32>
    %229 = arith.mulf %227, %228 : vector<8x128xf32>
    %230 = arith.addf %222, %229 : vector<8x128xf32>
    %231 = math.tanh %216 : vector<8x128xf32>
    %cst_93 = arith.constant 5.000000e-01 : f32
    %232 = vector.broadcast %cst_93 : f32 to vector<8x128xf32>
    %233 = arith.mulf %232, %231 : vector<8x128xf32>
    %cst_94 = arith.constant 5.000000e-01 : f32
    %234 = vector.broadcast %cst_94 : f32 to vector<8x128xf32>
    %235 = arith.addf %233, %234 : vector<8x128xf32>
    %236 = math.tanh %230 : vector<8x128xf32>
    %237 = arith.mulf %235, %236 : vector<8x128xf32>
    %c0_95 = arith.constant 0 : index
    %c0_96 = arith.constant 0 : index
    %238 = vector.load %arg4[%c0_95, %c0_96] : memref<128x128xf32, #tpu.memory_space<vmem>>, vector<128x128xf32>
    %cst_97 = arith.constant dense<0.000000e+00> : vector<8x128xf32>
    %239 = tpu.matmul %237, %238, %cst_97 {dimension_numbers = #tpu.dot_dimension_numbers<[1], [0], [0], [1], [0, 0, 1, 1], [], []>} : vector<8x128xf32>, vector<128x128xf32>, vector<8x128xf32> -> vector<8x128xf32>
    %c0_98 = arith.constant 0 : index
    %c0_99 = arith.constant 0 : index
    %240 = vector.load %arg5[%c0_98, %c0_99] : memref<1x128xf32, #tpu.memory_space<vmem>>, vector<1x128xf32>
    %241 = vector.broadcast %240 : vector<1x128xf32> to vector<8x128xf32>
    %242 = arith.addf %239, %241 : vector<8x128xf32>
    %c0_100 = arith.constant 0 : index
    %c0_101 = arith.constant 0 : index
    %243 = vector.load %arg6[%c0_100, %c0_101] : memref<8x128xf32, #tpu.memory_space<vmem>>, vector<8x128xf32>
    tpu.vector_store %arg6[%c0_100, %c0_101], %242 {strides = array<i32>} : memref<8x128xf32, #tpu.memory_space<vmem>>, vector<8x128xf32>,
    return
  }
}

</mosaic_0001>

<llo_original>
// kernel: _forward_impl.1
$region0: #{_forward_impl.1}
  #allocation0 [shape = 'u32[]', space=smem, size = 0x4, offset = 0x4, fixed_abs, tag = 'smem constant byte address 0x4 - core index']
  #allocation1 [shape = 'u32[144,128]{1,0:T(1,128)}', space=vmem, size = 0x12000, scoped, tag = 'internal scratch']
  #allocation2 [shape = 'f32[48,512]{1,0:T(8,128)}', space=vmem, size = 0x18000, scoped, tag = 'scratch operand']
  %s0 = inlined_call_operand.vmem [shape: f32[64,19], index: 0, kind: input, shape index: {}]
  %s1 = inlined_call_operand.hbm [shape: f32[19,512], index: 1, kind: input, shape index: {}]
  %s2 = inlined_call_operand.hbm [shape: f32[128,512], index: 2, kind: input, shape index: {}]
  %s3 = inlined_call_operand.hbm [shape: f32[1,512], index: 3, kind: input, shape index: {}]
  %s4 = inlined_call_operand.vmem [shape: f32[128,128], index: 4, kind: input, shape index: {}]
  %s5 = inlined_call_operand.vmem [shape: f32[1,128], index: 5, kind: input, shape index: {}]
  %s6 = inlined_call_operand.vmem [shape: f32[8,128], index: 6, kind: output, shape index: {}]
  %s7 = sld [smem:[#allocation0]]
  $region46: #{_forward_impl.1} parent=0
    _
  %s9 = ssub.s32 1, %s7
  %s10 = scalar_select 0, %s9, %s7
  $region1: #{_forward_impl.1} parent=0
    #allocation3 [shape = 'u8[49152]{0}', space=vmem, size = 0xc000, scoped, tag = 'input window, operand 1, single buffered']
    #allocation4 [shape = 's32[1]{0}', space=sflag, size = 0x4, scoped, tag = 'scoped memory for _forward_impl.1']
    #allocation5 [shape = 'u8[262144]{0}', space=vmem, size = 0x40000, scoped, tag = 'input window, operand 2, single buffered']
    #allocation6 [shape = 's32[1]{0}', space=sflag, size = 0x4, scoped, tag = 'scoped memory for _forward_impl.1']
    #allocation7 [shape = 'u8[2048]{0}', space=vmem, size = 0x800, scoped, tag = 'input window, operand 3, single buffered']
    %11 = vsyncpa [#allocation4], 0
    %12 = vsyncpa [#allocation6], 0
    // Predicated region
    $region2: #{_forward_impl.1} parent=1 // pred_check
      _
    $region3: #{_forward_impl.1} parent=1 // pred_check_branch
      %14 = sbr.rel (0) target = $region5
    $region4: #{_forward_impl.1} parent=1 // pred_region
      _
    $region5: #{_forward_impl.1} parent=1 // pred_fallthru
      _
    // Predicated region
    $region6: #{_forward_impl.1} parent=1 // pred_check
      _
    $region7: #{_forward_impl.1} parent=1 // pred_check_branch
      %16 = sbr.rel (0) target = $region9
    $region8: #{_forward_impl.1} parent=1 // pred_region
      %s18 = ssub.s32 1536, 1536
      %19 = vsyncadd [#allocation4], %s18
      %s20 = sshll.u32 [#allocation3], 4
      %s21 = int_to_ptr.vmem [resolvable:$true] %s20
      %26 = dma.hbm_to_vmem [thread:$0]  %s1, 1536, %s21, [#allocation4], 512, 512, 32
    $region9: #{_forward_impl.1} parent=1 // pred_fallthru
      _
    // Predicated region
    $region10: #{_forward_impl.1} parent=1 // pred_check
      _
    $region11: #{_forward_impl.1} parent=1 // pred_check_branch
      %28 = sbr.rel (0) target = $region13
    $region12: #{_forward_impl.1} parent=1 // pred_region
      %s30 = ssub.s32 8192, 8192
      %31 = vsyncadd [#allocation6], %s30
      %s32 = sshll.u32 [#allocation5], 4
      %s33 = int_to_ptr.vmem [resolvable:$true] %s32
      %38 = dma.hbm_to_vmem [thread:$0]  %s2, 8192, %s33, [#allocation6], 512, 512, 32
    $region13: #{_forward_impl.1} parent=1 // pred_fallthru
      _
    // Predicated region
    $region14: #{_forward_impl.1} parent=1 // pred_check
      _
    $region15: #{_forward_impl.1} parent=1 // pred_check_branch
      %40 = sbr.rel (0) target = $region17
    $region16: #{_forward_impl.1} parent=1 // pred_region
      %s42 = ssub.s32 64, 64
      %43 = vsyncadd [#allocation6], %s42
      %s45 = sshll.u32 [#allocation7], 4
      %s46 = int_to_ptr.vmem [resolvable:$true] %s45
      %48 = dma.hbm_to_vmem [thread:$0]  %s3, 64, %s46, [#allocation6]
    $region17: #{_forward_impl.1} parent=1 // pred_fallthru
      _
    // Predicated region
    $region18: #{_forward_impl.1} parent=1 // pred_check
      _
    $region19: #{_forward_impl.1} parent=1 // pred_check_branch
      %50 = sbr.rel (0) target = $region21
    $region20: #{_forward_impl.1} parent=1 // pred_region
      _
    $region21: #{_forward_impl.1} parent=1 // pred_fallthru
      _
    // Predicated region
    $region22: #{_forward_impl.1} parent=1 // pred_check
      _
    $region23: #{_forward_impl.1} parent=1 // pred_check_branch
      %52 = sbr.rel (0) target = $region25
    $region24: #{_forward_impl.1} parent=1 // pred_region
      _
    $region25: #{_forward_impl.1} parent=1 // pred_fallthru
      _
    // Predicated region
    $region26: #{_forward_impl.1} parent=1 // pred_check
      _
    $region27: #{_forward_impl.1} parent=1 // pred_check_branch
      %54 = sbr.rel (0) target = $region29
    $region28: #{_forward_impl.1} parent=1 // pred_region
      %55 = dma.done [#allocation4], 1536
    $region29: #{_forward_impl.1} parent=1 // pred_fallthru
      _
    // Predicated region
    $region30: #{_forward_impl.1} parent=1 // pred_check
      _
    $region31: #{_forward_impl.1} parent=1 // pred_check_branch
      %57 = sbr.rel (0) target = $region33
    $region32: #{_forward_impl.1} parent=1 // pred_region
      %58 = dma.done [#allocation6], 8192
    $region33: #{_forward_impl.1} parent=1 // pred_fallthru
      _
    // Predicated region
    $region34: #{_forward_impl.1} parent=1 // pred_check
      _
    $region35: #{_forward_impl.1} parent=1 // pred_check_branch
      %60 = sbr.rel (0) target = $region37
    $region36: #{_forward_impl.1} parent=1 // pred_region
      %61 = dma.done [#allocation6], 64
    $region37: #{_forward_impl.1} parent=1 // pred_fallthru
      _
    %v62 = vld [vmem:[%s0] sm:$0xff]
    %v63 = vld [vmem:[#allocation3] sm:$0xff]
    %v64 = vld [vmem:[#allocation3 + $0x8] sm:$0xff]
    %v65 = vld [vmem:[#allocation3 + $0x10] sm:$0xff]
    %v66 = vld [vmem:[#allocation3 + $0x18] sm:$0xff]
    %v67 = vld [vmem:[#allocation3 + $0x20] sm:$0xff]
    %v68 = vld [vmem:[#allocation3 + $0x28] sm:$0xff]
    %v69 = vld [vmem:[#allocation3 + $0x30] sm:$0xff]
    %v70 = vld [vmem:[#allocation3 + $0x38] sm:$0xff]
    %v71 = vld [vmem:[#allocation3 + $0x40] sm:$0x7]
    %v72 = vld [vmem:[#allocation3 + $0x48] sm:$0x7]
    %v73 = vld [vmem:[#allocation3 + $0x50] sm:$0x7]
    %v74 = vld [vmem:[#allocation3 + $0x58] sm:$0x7]
    %v75 = vld [vmem:[#allocation7] sm:$0xf]
    %v77 = vlaneseq
    %v78 = vshrl.u32 %v77, 7
    %v79 = vsub.s32 0, %v78
    %v80 = vrot.slane %v75, %v79
    %v81 = vlaneseq
    %v82 = vshrl.u32 %v81, 7
    %v83 = vsub.s32 1, %v82
    %v84 = vrot.slane %v75, %v83
    %v85 = vlaneseq
    %v86 = vshrl.u32 %v85, 7
    %v87 = vsub.s32 2, %v86
    %v88 = vrot.slane %v75, %v87
    %v89 = vlaneseq
    %v90 = vshrl.u32 %v89, 7
    %v91 = vsub.s32 3, %v90
    %v92 = vrot.slane %v75, %v91
    %vm97 = vcmask 154624
    %v99 = vsel %vm97, %v62, 0
    %vm101 = vcmask 1042432
    %v103 = vsel %vm101, %v71, 0
    %v106 = vsel %vm101, %v72, 0
    %v109 = vsel %vm101, %v73, 0
    %v112 = vsel %vm101, %v74, 0
    %114 = vmatprep.subr.mxu0 %v64
    %115 = vmatpush1.msra.mxu0 %v63
    %116 = vmatprep.subr.mxu0 %v68
    %117 = vmatpush1.msra.mxu0 %v67
    %118 = vmatprep.subr.mxu0 %v106
    %119 = vmatpush1.msra.mxu0 %v103
    %120 = vmatprep.subr.mxu0 0.0
    %121 = vmatpush1.msra.mxu0 0.0
    %122 = vmatprep.subr.mxu0 0.0
    %123 = vmatpush1.msra.mxu0 0.0
    %124 = vmatprep.subr.mxu0 0.0
    %125 = vmatpush1.msra.mxu0 0.0
    %126 = vmatprep.subr.mxu0 0.0
    %127 = vmatpush1.msra.mxu0 0.0
    %128 = vmatprep.subr.mxu0 0.0
    %129 = vmatpush1.msra.mxu0 0.0
    %130 = vmatprep.subr.mxu0 0.0
    %131 = vmatpush1.msra.mxu0 0.0
    %132 = vmatprep.subr.mxu0 0.0
    %133 = vmatpush1.msra.mxu0 0.0
    %134 = vmatprep.subr.mxu0 0.0
    %135 = vmatpush1.msra.mxu0 0.0
    %136 = vmatprep.subr.mxu0 0.0
    %137 = vmatpush1.msra.mxu0 0.0
    %138 = vmatprep.subr.mxu0 0.0
    %139 = vmatpush1.msra.mxu0 0.0
    %140 = vmatprep.subr.mxu0 0.0
    %141 = vmatpush1.msra.mxu0 0.0
    %142 = vmatprep.subr.mxu0 0.0
    %143 = vmatpush1.msra.mxu0 0.0
    %144 = vmatprep.subr.mxu0 0.0
    %145 = vmatpush1.msra.mxu0 0.0
    %146 = vmatprep.subr.mxu0 0.0
    %147 = vmatpush1.msra.mxu0 0.0
    %148 = vmatprep.subr.mxu0 0.0
    %149 = vmatpush1.msra.mxu0 0.0
    %150 = vmatprep.subr.mxu0 0.0
    %151 = vmatpush1.msra.mxu0 0.0
    %152 = vmatprep.subr.mxu0 0.0
    %153 = vmatpush1.msra.mxu0 0.0
    %154 = vmatprep.subr.mxu0 0.0
    %155 = vmatpush1.msra.mxu0 0.0
    %156 = vmatprep.subr.mxu0 0.0
    %157 = vmatpush1.msra.mxu0 0.0
    %158 = vmatprep.subr.mxu0 0.0
    %159 = vmatpush1.msra.mxu0 0.0
    %160 = vmatprep.subr.mxu0 0.0
    %161 = vmatpush1.msra.mxu0 0.0
    %162 = vmatprep.subr.mxu0 0.0
    %163 = vmatpush1.msra.mxu0 0.0
    %164 = vmatprep.subr.mxu0 0.0
    %165 = vmatpush1.msra.mxu0 0.0
    %166 = vmatprep.subr.mxu0 0.0
    %167 = vmatpush1.msra.mxu0 0.0
    %168 = vmatprep.subr.mxu0 0.0
    %169 = vmatpush1.msra.mxu0 0.0
    %170 = vmatprep.subr.mxu0 0.0
    %171 = vmatpush1.msra.mxu0 0.0
    %172 = vmatprep.subr.mxu0 0.0
    %173 = vmatpush1.msra.mxu0 0.0
    %174 = vmatprep.subr.mxu0 0.0
    %175 = vmatpush1.msra.mxu0 0.0
    %176 = vmatprep.subr.mxu0 0.0
    %177 = vmatpush1.msra.mxu0 0.0
    %178 = vmatprep.mubr.f32.mxu0 0.0
    %179 = vmatmul.mubr.f32.gmra.mrb[0].mxu0 %v99
    %v180 = vpop.f32.mrb[0].mxu0
    %v181 = vadd.f32 %v80, %v180
    %v182 = vpop.f32.mrb[0].mxu0
    %183 = vdwg.mxu0
    %184 = vmatprep.subr.mxu0 %v66
    %185 = vmatpush1.msra.mxu0 %v65
    %186 = vmatprep.subr.mxu0 %v70
    %187 = vmatpush1.msra.mxu0 %v69
    %188 = vmatprep.subr.mxu0 %v112
    %189 = vmatpush1.msra.mxu0 %v109
    %190 = vmatprep.subr.mxu0 0.0
    %191 = vmatpush1.msra.mxu0 0.0
    %192 = vmatprep.subr.mxu0 0.0
    %193 = vmatpush1.msra.mxu0 0.0
    %194 = vmatprep.subr.mxu0 0.0
    %195 = vmatpush1.msra.mxu0 0.0
    %196 = vmatprep.subr.mxu0 0.0
    %197 = vmatpush1.msra.mxu0 0.0
    %198 = vmatprep.subr.mxu0 0.0
    %199 = vmatpush1.msra.mxu0 0.0
    %200 = vmatprep.subr.mxu0 0.0
    %201 = vmatpush1.msra.mxu0 0.0
    %202 = vmatprep.subr.mxu0 0.0
    %203 = vmatpush1.msra.mxu0 0.0
    %204 = vmatprep.subr.mxu0 0.0
    %205 = vmatpush1.msra.mxu0 0.0
    %206 = vmatprep.subr.mxu0 0.0
    %207 = vmatpush1.msra.mxu0 0.0
    %208 = vmatprep.subr.mxu0 0.0
    %209 = vmatpush1.msra.mxu0 0.0
    %210 = vmatprep.subr.mxu0 0.0
    %211 = vmatpush1.msra.mxu0 0.0
    %212 = vmatprep.subr.mxu0 0.0
    %213 = vmatpush1.msra.mxu0 0.0
    %214 = vmatprep.subr.mxu0 0.0
    %215 = vmatpush1.msra.mxu0 0.0
    %216 = vmatprep.subr.mxu0 0.0
    %217 = vmatpush1.msra.mxu0 0.0
    %218 = vmatprep.subr.mxu0 0.0
    %219 = vmatpush1.msra.mxu0 0.0
    %220 = vmatprep.subr.mxu0 0.0
    %221 = vmatpush1.msra.mxu0 0.0
    %222 = vmatprep.subr.mxu0 0.0
    %223 = vmatpush1.msra.mxu0 0.0
    %224 = vmatprep.subr.mxu0 0.0
    %225 = vmatpush1.msra.mxu0 0.0
    %226 = vmatprep.subr.mxu0 0.0
    %227 = vmatpush1.msra.mxu0 0.0
    %228 = vmatprep.subr.mxu0 0.0
    %229 = vmatpush1.msra.mxu0 0.0
    %230 = vmatprep.subr.mxu0 0.0
    %231 = vmatpush1.msra.mxu0 0.0
    %232 = vmatprep.subr.mxu0 0.0
    %233 = vmatpush1.msra.mxu0 0.0
    %234 = vmatprep.subr.mxu0 0.0
    %235 = vmatpush1.msra.mxu0 0.0
    %236 = vmatprep.subr.mxu0 0.0
    %237 = vmatpush1.msra.mxu0 0.0
    %238 = vmatprep.subr.mxu0 0.0
    %239 = vmatpush1.msra.mxu0 0.0
    %240 = vmatprep.subr.mxu0 0.0
    %241 = vmatpush1.msra.mxu0 0.0
    %242 = vmatprep.subr.mxu0 0.0
    %243 = vmatpush1.msra.mxu0 0.0
    %244 = vmatprep.subr.mxu0 0.0
    %245 = vmatpush1.msra.mxu0 0.0
    %246 = vmatprep.subr.mxu0 0.0
    %247 = vmatpush1.msra.mxu0 0.0
    %248 = vmatprep.mubr.f32.mxu0 0.0
    %249 = vmatmul.mubr.f32.gmra.mrb[0].mxu0 %v99
    %v250 = vpop.f32.mrb[0].mxu0
    %v251 = vadd.f32 %v88, %v250
    %v252 = vpop.f32.mrb[0].mxu0
    %v253 = vadd.f32 %v92, %v252
    %254 = vdwg.mxu0
    %v255 = vtanh.pop %v181
    %v256 = vmul.f32 %v255, 0.5
    %v257 = vadd.f32 %v256, 0.5
    %v258 = vtanh.pop %v251
    %v259 = vmul.f32 %v257, %v258
    %v260 = vtanh.pop %v253
    %v261 = vmul.f32 %v260, 0.5
    %v262 = vadd.f32 %v261, 0.5
    %v263 = vtanh.pop %v259
    %v264 = vmul.f32 %v262, %v263
    %v265 = vld [vmem:[%s0 + $0x8] sm:$0xff]
    %v267 = vsel %vm97, %v265, 0
    %269 = vmatprep.subr.mxu0 %v64
    %270 = vmatpush1.msra.mxu0 %v63
    %271 = vmatprep.subr.mxu0 %v68
    %272 = vmatpush1.msra.mxu0 %v67
    %273 = vmatprep.subr.mxu0 %v106
    %274 = vmatpush1.msra.mxu0 %v103
    %275 = vmatprep.subr.mxu0 0.0
    %276 = vmatpush1.msra.mxu0 0.0
    %277 = vmatprep.subr.mxu0 0.0
    %278 = vmatpush1.msra.mxu0 0.0
    %279 = vmatprep.subr.mxu0 0.0
    %280 = vmatpush1.msra.mxu0 0.0
    %281 = vmatprep.subr.mxu0 0.0
    %282 = vmatpush1.msra.mxu0 0.0
    %283 = vmatprep.subr.mxu0 0.0
    %284 = vmatpush1.msra.mxu0 0.0
    %285 = vmatprep.subr.mxu0 0.0
    %286 = vmatpush1.msra.mxu0 0.0
    %287 = vmatprep.subr.mxu0 0.0
    %288 = vmatpush1.msra.mxu0 0.0
    %289 = vmatprep.subr.mxu0 0.0
    %290 = vmatpush1.msra.mxu0 0.0
    %291 = vmatprep.subr.mxu0 0.0
    %292 = vmatpush1.msra.mxu0 0.0
    %293 = vmatprep.subr.mxu0 0.0
    %294 = vmatpush1.msra.mxu0 0.0
    %295 = vmatprep.subr.mxu0 0.0
    %296 = vmatpush1.msra.mxu0 0.0
    %297 = vmatprep.subr.mxu0 0.0
    %298 = vmatpush1.msra.mxu0 0.0
    %299 = vmatprep.subr.mxu0 0.0
    %300 = vmatpush1.msra.mxu0 0.0
    %301 = vmatprep.subr.mxu0 0.0
    %302 = vmatpush1.msra.mxu0 0.0
    %303 = vmatprep.subr.mxu0 0.0
    %304 = vmatpush1.msra.mxu0 0.0
    %305 = vmatprep.subr.mxu0 0.0
    %306 = vmatpush1.msra.mxu0 0.0
    %307 = vmatprep.subr.mxu0 0.0
    %308 = vmatpush1.msra.mxu0 0.0
    %309 = vmatprep.subr.mxu0 0.0
    %310 = vmatpush1.msra.mxu0 0.0
    %311 = vmatprep.subr.mxu0 0.0
    %312 = vmatpush1.msra.mxu0 0.0
    %313 = vmatprep.subr.mxu0 0.0
    %314 = vmatpush1.msra.mxu0 0.0
    %315 = vmatprep.subr.mxu0 0.0
    %316 = vmatpush1.msra.mxu0 0.0
    %317 = vmatprep.subr.mxu0 0.0
    %318 = vmatpush1.msra.mxu0 0.0
    %319 = vmatprep.subr.mxu0 0.0
    %320 = vmatpush1.msra.mxu0 0.0
    %321 = vmatprep.subr.mxu0 0.0
    %322 = vmatpush1.msra.mxu0 0.0
    %323 = vmatprep.subr.mxu0 0.0
    %324 = vmatpush1.msra.mxu0 0.0
    %325 = vmatprep.subr.mxu0 0.0
    %326 = vmatpush1.msra.mxu0 0.0
    %327 = vmatprep.subr.mxu0 0.0
    %328 = vmatpush1.msra.mxu0 0.0
    %329 = vmatprep.subr.mxu0 0.0
    %330 = vmatpush1.msra.mxu0 0.0
    %331 = vmatprep.subr.mxu0 0.0
    %332 = vmatpush1.msra.mxu0 0.0
    %333 = vmatprep.mubr.f32.mxu0 0.0
    %334 = vmatmul.mubr.f32.gmra.mrb[0].mxu0 %v267
    %v335 = vpop.f32.mrb[0].mxu0
    %v336 = vadd.f32 %v80, %v335
    %v337 = vpop.f32.mrb[0].mxu0
    %v338 = vadd.f32 %v84, %v337
    %339 = vdwg.mxu0
    %340 = vmatprep.subr.mxu0 %v66
    %341 = vmatpush1.msra.mxu0 %v65
    %342 = vmatprep.subr.mxu0 %v70
    %343 = vmatpush1.msra.mxu0 %v69
    %344 = vmatprep.subr.mxu0 %v112
    %345 = vmatpush1.msra.mxu0 %v109
    %346 = vmatprep.subr.mxu0 0.0
    %347 = vmatpush1.msra.mxu0 0.0
    %348 = vmatprep.subr.mxu0 0.0
    %349 = vmatpush1.msra.mxu0 0.0
    %350 = vmatprep.subr.mxu0 0.0
    %351 = vmatpush1.msra.mxu0 0.0
    %352 = vmatprep.subr.mxu0 0.0
    %353 = vmatpush1.msra.mxu0 0.0
    %354 = vmatprep.subr.mxu0 0.0
    %355 = vmatpush1.msra.mxu0 0.0
    %356 = vmatprep.subr.mxu0 0.0
    %357 = vmatpush1.msra.mxu0 0.0
    %358 = vmatprep.subr.mxu0 0.0
    %359 = vmatpush1.msra.mxu0 0.0
    %360 = vmatprep.subr.mxu0 0.0
    %361 = vmatpush1.msra.mxu0 0.0
    %362 = vmatprep.subr.mxu0 0.0
    %363 = vmatpush1.msra.mxu0 0.0
    %364 = vmatprep.subr.mxu0 0.0
    %365 = vmatpush1.msra.mxu0 0.0
    %366 = vmatprep.subr.mxu0 0.0
    %367 = vmatpush1.msra.mxu0 0.0
    %368 = vmatprep.subr.mxu0 0.0
    %369 = vmatpush1.msra.mxu0 0.0
    %370 = vmatprep.subr.mxu0 0.0
    %371 = vmatpush1.msra.mxu0 0.0
    %372 = vmatprep.subr.mxu0 0.0
    %373 = vmatpush1.msra.mxu0 0.0
    %374 = vmatprep.subr.mxu0 0.0
    %375 = vmatpush1.msra.mxu0 0.0
    %376 = vmatprep.subr.mxu0 0.0
    %377 = vmatpush1.msra.mxu0 0.0
    %378 = vmatprep.subr.mxu0 0.0
    %379 = vmatpush1.msra.mxu0 0.0
    %380 = vmatprep.subr.mxu0 0.0
    %381 = vmatpush1.msra.mxu0 0.0
    %382 = vmatprep.subr.mxu0 0.0
    %383 = vmatpush1.msra.mxu0 0.0
    %384 = vmatprep.subr.mxu0 0.0
    %385 = vmatpush1.msra.mxu0 0.0
    %386 = vmatprep.subr.mxu0 0.0
    %387 = vmatpush1.msra.mxu0 0.0
    %388 = vmatprep.subr.mxu0 0.0
    %389 = vmatpush1.msra.mxu0 0.0
    %390 = vmatprep.subr.mxu0 0.0
    %391 = vmatpush1.msra.mxu0 0.0
    %392 = vmatprep.subr.mxu0 0.0
    %393 = vmatpush1.msra.mxu0 0.0
    %394 = vmatprep.subr.mxu0 0.0
    %395 = vmatpush1.msra.mxu0 0.0
    %396 = vmatprep.subr.mxu0 0.0
    %397 = vmatpush1.msra.mxu0 0.0
    %398 = vmatprep.subr.mxu0 0.0
    %399 = vmatpush1.msra.mxu0 0.0
    %400 = vmatprep.subr.mxu0 0.0
    %401 = vmatpush1.msra.mxu0 0.0
    %402 = vmatprep.subr.mxu0 0.0
    %403 = vmatpush1.msra.mxu0 0.0
    %404 = vmatprep.mubr.f32.mxu0 0.0
    %405 = vmatmul.mubr.f32.gmra.mrb[0].mxu0 %v267
    %v406 = vpop.f32.mrb[0].mxu0
    %v407 = vadd.f32 %v88, %v406
    %v408 = vpop.f32.mrb[0].mxu0
    %v409 = vadd.f32 %v92, %v408
    %410 = vdwg.mxu0
    %v411 = vld [vmem:[%s0 + $0x10] sm:$0xff]
    %v412 = vld [vmem:[%s0 + $0x18] sm:$0xff]
    %v413 = vld [vmem:[%s0 + $0x20] sm:$0xff]
    %v414 = vld [vmem:[%s0 + $0x28] sm:$0xff]
    %v415 = vld [vmem:[%s0 + $0x30] sm:$0xff]
    %v416 = vld [vmem:[%s0 + $0x38] sm:$0xff]
    %v418 = vsel %vm97, %v411, 0
    %v421 = vsel %vm97, %v412, 0
    %v424 = vsel %vm97, %v413, 0
    %v427 = vsel %vm97, %v414, 0
    %v430 = vsel %vm97, %v415, 0
    %v433 = vsel %vm97, %v416, 0
    %435 = vmatprep.subr.mxu0 %v64
    %436 = vmatpush1.msra.mxu0 %v63
    %437 = vmatprep.subr.mxu0 %v68
    %438 = vmatpush1.msra.mxu0 %v67
    %439 = vmatprep.subr.mxu0 %v106
    %440 = vmatpush1.msra.mxu0 %v103
    %441 = vmatprep.subr.mxu0 0.0
    %442 = vmatpush1.msra.mxu0 0.0
    %443 = vmatprep.subr.mxu0 0.0
    %444 = vmatpush1.msra.mxu0 0.0
    %445 = vmatprep.subr.mxu0 0.0
    %446 = vmatpush1.msra.mxu0 0.0
    %447 = vmatprep.subr.mxu0 0.0
    %448 = vmatpush1.msra.mxu0 0.0
    %449 = vmatprep.subr.mxu0 0.0
    %450 = vmatpush1.msra.mxu0 0.0
    %451 = vmatprep.subr.mxu0 0.0
    %452 = vmatpush1.msra.mxu0 0.0
    %453 = vmatprep.subr.mxu0 0.0
    %454 = vmatpush1.msra.mxu0 0.0
    %455 = vmatprep.subr.mxu0 0.0
    %456 = vmatpush1.msra.mxu0 0.0
    %457 = vmatprep.subr.mxu0 0.0
    %458 = vmatpush1.msra.mxu0 0.0
    %459 = vmatprep.subr.mxu0 0.0
    %460 = vmatpush1.msra.mxu0 0.0
    %461 = vmatprep.subr.mxu0 0.0
    %462 = vmatpush1.msra.mxu0 0.0
    %463 = vmatprep.subr.mxu0 0.0
    %464 = vmatpush1.msra.mxu0 0.0
    %465 = vmatprep.subr.mxu0 0.0
    %466 = vmatpush1.msra.mxu0 0.0
    %467 = vmatprep.subr.mxu0 0.0
    %468 = vmatpush1.msra.mxu0 0.0
    %469 = vmatprep.subr.mxu0 0.0
    %470 = vmatpush1.msra.mxu0 0.0
    %471 = vmatprep.subr.mxu0 0.0
    %472 = vmatpush1.msra.mxu0 0.0
    %473 = vmatprep.subr.mxu0 0.0
    %474 = vmatpush1.msra.mxu0 0.0
    %475 = vmatprep.subr.mxu0 0.0
    %476 = vmatpush1.msra.mxu0 0.0
    %477 = vmatprep.subr.mxu0 0.0
    %478 = vmatpush1.msra.mxu0 0.0
    %479 = vmatprep.subr.mxu0 0.0
    %480 = vmatpush1.msra.mxu0 0.0
    %481 = vmatprep.subr.mxu0 0.0
    %482 = vmatpush1.msra.mxu0 0.0
    %483 = vmatprep.subr.mxu0 0.0
    %484 = vmatpush1.msra.mxu0 0.0
    %485 = vmatprep.subr.mxu0 0.0
    %486 = vmatpush1.msra.mxu0 0.0
    %487 = vmatprep.subr.mxu0 0.0
    %488 = vmatpush1.msra.mxu0 0.0
    %489 = vmatprep.subr.mxu0 0.0
    %490 = vmatpush1.msra.mxu0 0.0
    %491 = vmatprep.subr.mxu0 0.0
    %492 = vmatpush1.msra.mxu0 0.0
    %493 = vmatprep.subr.mxu0 0.0
    %494 = vmatpush1.msra.mxu0 0.0
    %495 = vmatprep.subr.mxu0 0.0
    %496 = vmatpush1.msra.mxu0 0.0
    %497 = vmatprep.subr.mxu0 0.0
    %498 = vmatpush1.msra.mxu0 0.0
    %499 = vmatprep.mubr.f32.mxu0 0.0
    %500 = vmatmul.mubr.f32.gmra.mrb[0].mxu0 %v418
    %v501 = vpop.f32.mrb[0].mxu0
    %v502 = vadd.f32 %v80, %v501
    %v503 = vpop.f32.mrb[0].mxu0
    %v504 = vadd.f32 %v84, %v503
    %505 = vmatprep.mubr.f32.mxu0 0.0
    %506 = vmatmul.mubr.f32.gmra.mrb[0].mxu0 %v421
    %v507 = vpop.f32.mrb[0].mxu0
    %v508 = vadd.f32 %v80, %v507
    %v509 = vpop.f32.mrb[0].mxu0
    %v510 = vadd.f32 %v84, %v509
    %511 = vmatprep.mubr.f32.mxu0 0.0
    %512 = vmatmul.mubr.f32.gmra.mrb[0].mxu0 %v424
    %v513 = vpop.f32.mrb[0].mxu0
    %v514 = vadd.f32 %v80, %v513
    %v515 = vpop.f32.mrb[0].mxu0
    %v516 = vadd.f32 %v84, %v515
    %517 = vmatprep.mubr.f32.mxu0 0.0
    %518 = vmatmul.mubr.f32.gmra.mrb[0].mxu0 %v427
    %v519 = vpop.f32.mrb[0].mxu0
    %v520 = vadd.f32 %v80, %v519
    %v521 = vpop.f32.mrb[0].mxu0
    %v522 = vadd.f32 %v84, %v521
    %523 = vmatprep.mubr.f32.mxu0 0.0
    %524 = vmatmul.mubr.f32.gmra.mrb[0].mxu0 %v430
    %v525 = vpop.f32.mrb[0].mxu0
    %v526 = vadd.f32 %v80, %v525
    %v527 = vpop.f32.mrb[0].mxu0
    %v528 = vadd.f32 %v84, %v527
    %529 = vmatprep.mubr.f32.mxu0 0.0
    %530 = vmatmul.mubr.f32.gmra.mrb[0].mxu0 %v433
    %v531 = vpop.f32.mrb[0].mxu0
    %v532 = vadd.f32 %v80, %v531
    %v533 = vpop.f32.mrb[0].mxu0
    %v534 = vadd.f32 %v84, %v533
    %535 = vdwg.mxu0
    %536 = vmatprep.subr.mxu0 %v66
    %537 = vmatpush1.msra.mxu0 %v65
    %538 = vmatprep.subr.mxu0 %v70
    %539 = vmatpush1.msra.mxu0 %v69
    %540 = vmatprep.subr.mxu0 %v112
    %541 = vmatpush1.msra.mxu0 %v109
    %542 = vmatprep.subr.mxu0 0.0
    %543 = vmatpush1.msra.mxu0 0.0
    %544 = vmatprep.subr.mxu0 0.0
    %545 = vmatpush1.msra.mxu0 0.0
    %546 = vmatprep.subr.mxu0 0.0
    %547 = vmatpush1.msra.mxu0 0.0
    %548 = vmatprep.subr.mxu0 0.0
    %549 = vmatpush1.msra.mxu0 0.0
    %550 = vmatprep.subr.mxu0 0.0
    %551 = vmatpush1.msra.mxu0 0.0
    %552 = vmatprep.subr.mxu0 0.0
    %553 = vmatpush1.msra.mxu0 0.0
    %554 = vmatprep.subr.mxu0 0.0
    %555 = vmatpush1.msra.mxu0 0.0
    %556 = vmatprep.subr.mxu0 0.0
    %557 = vmatpush1.msra.mxu0 0.0
    %558 = vmatprep.subr.mxu0 0.0
    %559 = vmatpush1.msra.mxu0 0.0
    %560 = vmatprep.subr.mxu0 0.0
    %561 = vmatpush1.msra.mxu0 0.0
    %562 = vmatprep.subr.mxu0 0.0
    %563 = vmatpush1.msra.mxu0 0.0
    %564 = vmatprep.subr.mxu0 0.0
    %565 = vmatpush1.msra.mxu0 0.0
    %566 = vmatprep.subr.mxu0 0.0
    %567 = vmatpush1.msra.mxu0 0.0
    %568 = vmatprep.subr.mxu0 0.0
    %569 = vmatpush1.msra.mxu0 0.0
    %570 = vmatprep.subr.mxu0 0.0
    %571 = vmatpush1.msra.mxu0 0.0
    %572 = vmatprep.subr.mxu0 0.0
    %573 = vmatpush1.msra.mxu0 0.0
    %574 = vmatprep.subr.mxu0 0.0
    %575 = vmatpush1.msra.mxu0 0.0
    %576 = vmatprep.subr.mxu0 0.0
    %577 = vmatpush1.msra.mxu0 0.0
    %578 = vmatprep.subr.mxu0 0.0
    %579 = vmatpush1.msra.mxu0 0.0
    %580 = vmatprep.subr.mxu0 0.0
    %581 = vmatpush1.msra.mxu0 0.0
    %582 = vmatprep.subr.mxu0 0.0
    %583 = vmatpush1.msra.mxu0 0.0
    %584 = vmatprep.subr.mxu0 0.0
    %585 = vmatpush1.msra.mxu0 0.0
    %586 = vmatprep.subr.mxu0 0.0
    %587 = vmatpush1.msra.mxu0 0.0
    %588 = vmatprep.subr.mxu0 0.0
    %589 = vmatpush1.msra.mxu0 0.0
    %590 = vmatprep.subr.mxu0 0.0
    %591 = vmatpush1.msra.mxu0 0.0
    %592 = vmatprep.subr.mxu0 0.0
    %593 = vmatpush1.msra.mxu0 0.0
    %594 = vmatprep.subr.mxu0 0.0
    %595 = vmatpush1.msra.mxu0 0.0
    %596 = vmatprep.subr.mxu0 0.0
    %597 = vmatpush1.msra.mxu0 0.0
    %598 = vmatprep.subr.mxu0 0.0
    %599 = vmatpush1.msra.mxu0 0.0
    %600 = vmatprep.mubr.f32.mxu0 0.0
    %601 = vmatmul.mubr.f32.gmra.mrb[0].mxu0 %v418
    %v602 = vpop.f32.mrb[0].mxu0
    %v603 = vadd.f32 %v88, %v602
    %v604 = vpop.f32.mrb[0].mxu0
    %v605 = vadd.f32 %v92, %v604
    %606 = vmatprep.mubr.f32.mxu0 0.0
    %607 = vmatmul.mubr.f32.gmra.mrb[0].mxu0 %v421
    %v608 = vpop.f32.mrb[0].mxu0
    %v609 = vadd.f32 %v88, %v608
    %v610 = vpop.f32.mrb[0].mxu0
    %v611 = vadd.f32 %v92, %v610
    %612 = vmatprep.mubr.f32.mxu0 0.0
    %613 = vmatmul.mubr.f32.gmra.mrb[0].mxu0 %v424
    %v614 = vpop.f32.mrb[0].mxu0
    %v615 = vadd.f32 %v88, %v614
    %v616 = vpop.f32.mrb[0].mxu0
    %v617 = vadd.f32 %v92, %v616
    %618 = vmatprep.mubr.f32.mxu0 0.0
    %619 = vmatmul.mubr.f32.gmra.mrb[0].mxu0 %v427
    %v620 = vpop.f32.mrb[0].mxu0
    %v621 = vadd.f32 %v88, %v620
    %v622 = vpop.f32.mrb[0].mxu0
    %v623 = vadd.f32 %v92, %v622
    %624 = vmatprep.mubr.f32.mxu0 0.0
    %625 = vmatmul.mubr.f32.gmra.mrb[0].mxu0 %v430
    %v626 = vpop.f32.mrb[0].mxu0
    %v627 = vadd.f32 %v88, %v626
    %v628 = vpop.f32.mrb[0].mxu0
    %v629 = vadd.f32 %v92, %v628
    %630 = vmatprep.mubr.f32.mxu0 0.0
    %631 = vmatmul.mubr.f32.gmra.mrb[0].mxu0 %v433
    %v632 = vpop.f32.mrb[0].mxu0
    %v633 = vadd.f32 %v88, %v632
    %v634 = vpop.f32.mrb[0].mxu0
    %v635 = vadd.f32 %v92, %v634
    %636 = vdwg.mxu0
    %637 = vst [vmem:[#allocation2] sm:$0xff] %v502
    %638 = vst [vmem:[#allocation2 + $0x8] sm:$0xff] %v504
    %639 = vst [vmem:[#allocation2 + $0x10] sm:$0xff] %v603
    %640 = vst [vmem:[#allocation2 + $0x18] sm:$0xff] %v605
    %641 = vst [vmem:[#allocation2 + $0x20] sm:$0xff] %v508
    %642 = vst [vmem:[#allocation2 + $0x28] sm:$0xff] %v510
    %643 = vst [vmem:[#allocation2 + $0x30] sm:$0xff] %v609
    %644 = vst [vmem:[#allocation2 + $0x38] sm:$0xff] %v611
    %645 = vst [vmem:[#allocation2 + $0x40] sm:$0xff] %v514
    %646 = vst [vmem:[#allocation2 + $0x48] sm:$0xff] %v516
    %647 = vst [vmem:[#allocation2 + $0x50] sm:$0xff] %v615
    %648 = vst [vmem:[#allocation2 + $0x58] sm:$0xff] %v617
    %649 = vst [vmem:[#allocation2 + $0x60] sm:$0xff] %v520
    %650 = vst [vmem:[#allocation2 + $0x68] sm:$0xff] %v522
    %651 = vst [vmem:[#allocation2 + $0x70] sm:$0xff] %v621
    %652 = vst [vmem:[#allocation2 + $0x78] sm:$0xff] %v623
    %653 = vst [vmem:[#allocation2 + $0x80] sm:$0xff] %v526
    %654 = vst [vmem:[#allocation2 + $0x88] sm:$0xff] %v528
    %655 = vst [vmem:[#allocation2 + $0x90] sm:$0xff] %v627
    %656 = vst [vmem:[#allocation2 + $0x98] sm:$0xff] %v629
    %657 = vst [vmem:[#allocation2 + $0xa0] sm:$0xff] %v532
    %658 = vst [vmem:[#allocation2 + $0xa8] sm:$0xff] %v534
    %659 = vst [vmem:[#allocation2 + $0xb0] sm:$0xff] %v633
    %660 = vst [vmem:[#allocation2 + $0xb8] sm:$0xff] %v635
    %v661 = vld [vmem:[#allocation5] sm:$0xff]
    %v662 = vld [vmem:[#allocation5 + $0x8] sm:$0xff]
    %v663 = vld [vmem:[#allocation5 + $0x10] sm:$0xff]
    %v664 = vld [vmem:[#allocation5 + $0x18] sm:$0xff]
    %v665 = vld [vmem:[#allocation5 + $0x20] sm:$0xff]
    %v666 = vld [vmem:[#allocation5 + $0x28] sm:$0xff]
    %v667 = vld [vmem:[#allocation5 + $0x30] sm:$0xff]
    %v668 = vld [vmem:[#allocation5 + $0x38] sm:$0xff]
    %v669 = vld [vmem:[#allocation5 + $0x40] sm:$0xff]
    %v670 = vld [vmem:[#allocation5 + $0x48] sm:$0xff]
    %v671 = vld [vmem:[#allocation5 + $0x50] sm:$0xff]
    %v672 = vld [vmem:[#allocation5 + $0x58] sm:$0xff]
    %v673 = vld [vmem:[#allocation5 + $0x60] sm:$0xff]
    %v674 = vld [vmem:[#allocation5 + $0x68] sm:$0xff]
    %v675 = vld [vmem:[#allocation5 + $0x70] sm:$0xff]
    %v676 = vld [vmem:[#allocation5 + $0x78] sm:$0xff]
    %v677 = vld [vmem:[#allocation5 + $0x80] sm:$0xff]
    %v678 = vld [vmem:[#allocation5 + $0x88] sm:$0xff]
    %v679 = vld [vmem:[#allocation5 + $0x90] sm:$0xff]
    %v680 = vld [vmem:[#allocation5 + $0x98] sm:$0xff]
    %v681 = vld [vmem:[#allocation5 + $0xa0] sm:$0xff]
    %v682 = vld [vmem:[#allocation5 + $0xa8] sm:$0xff]
    %v683 = vld [vmem:[#allocation5 + $0xb0] sm:$0xff]
    %v684 = vld [vmem:[#allocation5 + $0xb8] sm:$0xff]
    %v685 = vld [vmem:[#allocation5 + $0xc0] sm:$0xff]
    %v686 = vld [vmem:[#allocation5 + $0xc8] sm:$0xff]
    %v687 = vld [vmem:[#allocation5 + $0xd0] sm:$0xff]
    %v688 = vld [vmem:[#allocation5 + $0xd8] sm:$0xff]
    %v689 = vld [vmem:[#allocation5 + $0xe0] sm:$0xff]
    %v690 = vld [vmem:[#allocation5 + $0xe8] sm:$0xff]
    %v691 = vld [vmem:[#allocation5 + $0xf0] sm:$0xff]
    %v692 = vld [vmem:[#allocation5 + $0xf8] sm:$0xff]
    %v693 = vld [vmem:[#allocation5 + $0x100] sm:$0xff]
    %v694 = vld [vmem:[#allocation5 + $0x108] sm:$0xff]
    %v695 = vld [vmem:[#allocation5 + $0x110] sm:$0xff]
    %v696 = vld [vmem:[#allocation5 + $0x118] sm:$0xff]
    %v697 = vld [vmem:[#allocation5 + $0x120] sm:$0xff]
    %v698 = vld [vmem:[#allocation5 + $0x128] sm:$0xff]
    %v699 = vld [vmem:[#allocation5 + $0x130] sm:$0xff]
    %v700 = vld [vmem:[#allocation5 + $0x138] sm:$0xff]
    %v701 = vld [vmem:[#allocation5 + $0x140] sm:$0xff]
    %v702 = vld [vmem:[#allocation5 + $0x148] sm:$0xff]
    %v703 = vld [vmem:[#allocation5 + $0x150] sm:$0xff]
    %v704 = vld [vmem:[#allocation5 + $0x158] sm:$0xff]
    %v705 = vld [vmem:[#allocation5 + $0x160] sm:$0xff]
    %v706 = vld [vmem:[#allocation5 + $0x168] sm:$0xff]
    %v707 = vld [vmem:[#allocation5 + $0x170] sm:$0xff]
    %v708 = vld [vmem:[#allocation5 + $0x178] sm:$0xff]
    %v709 = vld [vmem:[#allocation5 + $0x180] sm:$0xff]
    %v710 = vld [vmem:[#allocation5 + $0x188] sm:$0xff]
    %v711 = vld [vmem:[#allocation5 + $0x190] sm:$0xff]
    %v712 = vld [vmem:[#allocation5 + $0x198] sm:$0xff]
    %v713 = vld [vmem:[#allocation5 + $0x1a0] sm:$0xff]
    %v714 = vld [vmem:[#allocation5 + $0x1a8] sm:$0xff]
    %v715 = vld [vmem:[#allocation5 + $0x1b0] sm:$0xff]
    %v716 = vld [vmem:[#allocation5 + $0x1b8] sm:$0xff]
    %v717 = vld [vmem:[#allocation5 + $0x1c0] sm:$0xff]
    %v718 = vld [vmem:[#allocation5 + $0x1c8] sm:$0xff]
    %v719 = vld [vmem:[#allocation5 + $0x1d0] sm:$0xff]
    %v720 = vld [vmem:[#allocation5 + $0x1d8] sm:$0xff]
    %v721 = vld [vmem:[#allocation5 + $0x1e0] sm:$0xff]
    %v722 = vld [vmem:[#allocation5 + $0x1e8] sm:$0xff]
    %v723 = vld [vmem:[#allocation5 + $0x1f0] sm:$0xff]
    %v724 = vld [vmem:[#allocation5 + $0x1f8] sm:$0xff]
    %725 = vmatprep.subr.mxu0 %v662
    %726 = vmatpush1.msra.mxu0 %v661
    %727 = vmatprep.subr.mxu0 %v666
    %728 = vmatpush1.msra.mxu0 %v665
    %729 = vmatprep.subr.mxu0 %v670
    %730 = vmatpush1.msra.mxu0 %v669
    %731 = vmatprep.subr.mxu0 %v674
    %732 = vmatpush1.msra.mxu0 %v673
    %733 = vmatprep.subr.mxu0 %v678
    %734 = vmatpush1.msra.mxu0 %v677
    %735 = vmatprep.subr.mxu0 %v682
    %736 = vmatpush1.msra.mxu0 %v681
    %737 = vmatprep.subr.mxu0 %v686
    %738 = vmatpush1.msra.mxu0 %v685
    %739 = vmatprep.subr.mxu0 %v690
    %740 = vmatpush1.msra.mxu0 %v689
    %741 = vmatprep.subr.mxu0 %v694
    %742 = vmatpush1.msra.mxu0 %v693
    %743 = vmatprep.subr.mxu0 %v698
    %744 = vmatpush1.msra.mxu0 %v697
    %745 = vmatprep.subr.mxu0 %v702
    %746 = vmatpush1.msra.mxu0 %v701
    %747 = vmatprep.subr.mxu0 %v706
    %748 = vmatpush1.msra.mxu0 %v705
    %749 = vmatprep.subr.mxu0 %v710
    %750 = vmatpush1.msra.mxu0 %v709
    %751 = vmatprep.subr.mxu0 %v714
    %752 = vmatpush1.msra.mxu0 %v713
    %753 = vmatprep.subr.mxu0 %v718
    %754 = vmatpush1.msra.mxu0 %v717
    %755 = vmatprep.subr.mxu0 %v722
    %756 = vmatpush1.msra.mxu0 %v721
    %757 = vmatprep.subr.mxu0 0.0
    %758 = vmatpush1.msra.mxu0 0.0
    %759 = vmatprep.subr.mxu0 0.0
    %760 = vmatpush1.msra.mxu0 0.0
    %761 = vmatprep.subr.mxu0 0.0
    %762 = vmatpush1.msra.mxu0 0.0
    %763 = vmatprep.subr.mxu0 0.0
    %764 = vmatpush1.msra.mxu0 0.0
    %765 = vmatprep.subr.mxu0 0.0
    %766 = vmatpush1.msra.mxu0 0.0
    %767 = vmatprep.subr.mxu0 0.0
    %768 = vmatpush1.msra.mxu0 0.0
    %769 = vmatprep.subr.mxu0 0.0
    %770 = vmatpush1.msra.mxu0 0.0
    %771 = vmatprep.subr.mxu0 0.0
    %772 = vmatpush1.msra.mxu0 0.0
    %773 = vmatprep.subr.mxu0 0.0
    %774 = vmatpush1.msra.mxu0 0.0
    %775 = vmatprep.subr.mxu0 0.0
    %776 = vmatpush1.msra.mxu0 0.0
    %777 = vmatprep.subr.mxu0 0.0
    %778 = vmatpush1.msra.mxu0 0.0
    %779 = vmatprep.subr.mxu0 0.0
    %780 = vmatpush1.msra.mxu0 0.0
    %781 = vmatprep.subr.mxu0 0.0
    %782 = vmatpush1.msra.mxu0 0.0
    %783 = vmatprep.subr.mxu0 0.0
    %784 = vmatpush1.msra.mxu0 0.0
    %785 = vmatprep.subr.mxu0 0.0
    %786 = vmatpush1.msra.mxu0 0.0
    %787 = vmatprep.subr.mxu0 0.0
    %788 = vmatpush1.msra.mxu0 0.0
    %789 = vmatprep.mubr.f32.mxu0 0.0
    %790 = vmatmul.mubr.f32.gmra.mrb[0].mxu0 %v264
    %v791 = vpop.f32.mrb[0].mxu0
    %v792 = vadd.f32 0.0, %v791
    %v793 = vpop.f32.mrb[0].mxu0
    %v794 = vadd.f32 0.0, %v793
    %795 = vdwg.mxu0
    %796 = vmatprep.subr.mxu0 %v664
    %797 = vmatpush1.msra.mxu0 %v663
    %798 = vmatprep.subr.mxu0 %v668
    %799 = vmatpush1.msra.mxu0 %v667
    %800 = vmatprep.subr.mxu0 %v672
    %801 = vmatpush1.msra.mxu0 %v671
    %802 = vmatprep.subr.mxu0 %v676
    %803 = vmatpush1.msra.mxu0 %v675
    %804 = vmatprep.subr.mxu0 %v680
    %805 = vmatpush1.msra.mxu0 %v679
    %806 = vmatprep.subr.mxu0 %v684
    %807 = vmatpush1.msra.mxu0 %v683
    %808 = vmatprep.subr.mxu0 %v688
    %809 = vmatpush1.msra.mxu0 %v687
    %810 = vmatprep.subr.mxu0 %v692
    %811 = vmatpush1.msra.mxu0 %v691
    %812 = vmatprep.subr.mxu0 %v696
    %813 = vmatpush1.msra.mxu0 %v695
    %814 = vmatprep.subr.mxu0 %v700
    %815 = vmatpush1.msra.mxu0 %v699
    %816 = vmatprep.subr.mxu0 %v704
    %817 = vmatpush1.msra.mxu0 %v703
    %818 = vmatprep.subr.mxu0 %v708
    %819 = vmatpush1.msra.mxu0 %v707
    %820 = vmatprep.subr.mxu0 %v712
    %821 = vmatpush1.msra.mxu0 %v711
    %822 = vmatprep.subr.mxu0 %v716
    %823 = vmatpush1.msra.mxu0 %v715
    %824 = vmatprep.subr.mxu0 %v720
    %825 = vmatpush1.msra.mxu0 %v719
    %826 = vmatprep.subr.mxu0 %v724
    %827 = vmatpush1.msra.mxu0 %v723
    %828 = vmatprep.subr.mxu0 0.0
    %829 = vmatpush1.msra.mxu0 0.0
    %830 = vmatprep.subr.mxu0 0.0
    %831 = vmatpush1.msra.mxu0 0.0
    %832 = vmatprep.subr.mxu0 0.0
    %833 = vmatpush1.msra.mxu0 0.0
    %834 = vmatprep.subr.mxu0 0.0
    %835 = vmatpush1.msra.mxu0 0.0
    %836 = vmatprep.subr.mxu0 0.0
    %837 = vmatpush1.msra.mxu0 0.0
    %838 = vmatprep.subr.mxu0 0.0
    %839 = vmatpush1.msra.mxu0 0.0
    %840 = vmatprep.subr.mxu0 0.0
    %841 = vmatpush1.msra.mxu0 0.0
    %842 = vmatprep.subr.mxu0 0.0
    %843 = vmatpush1.msra.mxu0 0.0
    %844 = vmatprep.subr.mxu0 0.0
    %845 = vmatpush1.msra.mxu0 0.0
    %846 = vmatprep.subr.mxu0 0.0
    %847 = vmatpush1.msra.mxu0 0.0
    %848 = vmatprep.subr.mxu0 0.0
    %849 = vmatpush1.msra.mxu0 0.0
    %850 = vmatprep.subr.mxu0 0.0
    %851 = vmatpush1.msra.mxu0 0.0
    %852 = vmatprep.subr.mxu0 0.0
    %853 = vmatpush1.msra.mxu0 0.0
    %854 = vmatprep.subr.mxu0 0.0
    %855 = vmatpush1.msra.mxu0 0.0
    %856 = vmatprep.subr.mxu0 0.0
    %857 = vmatpush1.msra.mxu0 0.0
    %858 = vmatprep.subr.mxu0 0.0
    %859 = vmatpush1.msra.mxu0 0.0
    %860 = vmatprep.mubr.f32.mxu0 0.0
    %861 = vmatmul.mubr.f32.gmra.mrb[0].mxu0 %v264
    %v862 = vpop.f32.mrb[0].mxu0
    %v863 = vadd.f32 0.0, %v862
    %v864 = vpop.f32.mrb[0].mxu0
    %v865 = vadd.f32 0.0, %v864
    %866 = vdwg.mxu0
    %v867 = vadd.f32 %v336, %v792
    %v868 = vadd.f32 %v338, %v794
    %v869 = vadd.f32 %v407, %v863
    %v870 = vadd.f32 %v409, %v865
    %v871 = vtanh.pop %v868
    %v872 = vmul.f32 %v871, 0.5
    %v873 = vadd.f32 %v872, 0.5
    %v874 = vmul.f32 %v873, %v259
    %v875 = vtanh.pop %v867
    %v876 = vmul.f32 %v875, 0.5
    %v877 = vadd.f32 %v876, 0.5
    %v878 = vtanh.pop %v869
    %v879 = vmul.f32 %v877, %v878
    %v880 = vadd.f32 %v874, %v879
    %v881 = vtanh.pop %v870
    %v882 = vmul.f32 %v881, 0.5
    %v883 = vadd.f32 %v882, 0.5
    %v884 = vtanh.pop %v880
    %v885 = vmul.f32 %v883, %v884
    %v886 = vld [vmem:[#allocation2] sm:$0xff]
    %v887 = vld [vmem:[#allocation2 + $0x8] sm:$0xff]
    %v888 = vld [vmem:[#allocation2 + $0x10] sm:$0xff]
    %v889 = vld [vmem:[#allocation2 + $0x18] sm:$0xff]
    %890 = vmatprep.subr.mxu0 %v662
    %891 = vmatpush1.msra.mxu0 %v661
    %892 = vmatprep.subr.mxu0 %v666
    %893 = vmatpush1.msra.mxu0 %v665
    %894 = vmatprep.subr.mxu0 %v670
    %895 = vmatpush1.msra.mxu0 %v669
    %896 = vmatprep.subr.mxu0 %v674
    %897 = vmatpush1.msra.mxu0 %v673
    %898 = vmatprep.subr.mxu0 %v678
    %899 = vmatpush1.msra.mxu0 %v677
    %900 = vmatprep.subr.mxu0 %v682
    %901 = vmatpush1.msra.mxu0 %v681
    %902 = vmatprep.subr.mxu0 %v686
    %903 = vmatpush1.msra.mxu0 %v685
    %904 = vmatprep.subr.mxu0 %v690
    %905 = vmatpush1.msra.mxu0 %v689
    %906 = vmatprep.subr.mxu0 %v694
    %907 = vmatpush1.msra.mxu0 %v693
    %908 = vmatprep.subr.mxu0 %v698
    %909 = vmatpush1.msra.mxu0 %v697
    %910 = vmatprep.subr.mxu0 %v702
    %911 = vmatpush1.msra.mxu0 %v701
    %912 = vmatprep.subr.mxu0 %v706
    %913 = vmatpush1.msra.mxu0 %v705
    %914 = vmatprep.subr.mxu0 %v710
    %915 = vmatpush1.msra.mxu0 %v709
    %916 = vmatprep.subr.mxu0 %v714
    %917 = vmatpush1.msra.mxu0 %v713
    %918 = vmatprep.subr.mxu0 %v718
    %919 = vmatpush1.msra.mxu0 %v717
    %920 = vmatprep.subr.mxu0 %v722
    %921 = vmatpush1.msra.mxu0 %v721
    %922 = vmatprep.subr.mxu0 0.0
    %923 = vmatpush1.msra.mxu0 0.0
    %924 = vmatprep.subr.mxu0 0.0
    %925 = vmatpush1.msra.mxu0 0.0
    %926 = vmatprep.subr.mxu0 0.0
    %927 = vmatpush1.msra.mxu0 0.0
    %928 = vmatprep.subr.mxu0 0.0
    %929 = vmatpush1.msra.mxu0 0.0
    %930 = vmatprep.subr.mxu0 0.0
    %931 = vmatpush1.msra.mxu0 0.0
    %932 = vmatprep.subr.mxu0 0.0
    %933 = vmatpush1.msra.mxu0 0.0
    %934 = vmatprep.subr.mxu0 0.0
    %935 = vmatpush1.msra.mxu0 0.0
    %936 = vmatprep.subr.mxu0 0.0
    %937 = vmatpush1.msra.mxu0 0.0
    %938 = vmatprep.subr.mxu0 0.0
    %939 = vmatpush1.msra.mxu0 0.0
    %940 = vmatprep.subr.mxu0 0.0
    %941 = vmatpush1.msra.mxu0 0.0
    %942 = vmatprep.subr.mxu0 0.0
    %943 = vmatpush1.msra.mxu0 0.0
    %944 = vmatprep.subr.mxu0 0.0
    %945 = vmatpush1.msra.mxu0 0.0
    %946 = vmatprep.subr.mxu0 0.0
    %947 = vmatpush1.msra.mxu0 0.0
    %948 = vmatprep.subr.mxu0 0.0
    %949 = vmatpush1.msra.mxu0 0.0
    %950 = vmatprep.subr.mxu0 0.0
    %951 = vmatpush1.msra.mxu0 0.0
    %952 = vmatprep.subr.mxu0 0.0
    %953 = vmatpush1.msra.mxu0 0.0
    %954 = vmatprep.mubr.f32.mxu0 0.0
    %955 = vmatmul.mubr.f32.gmra.mrb[0].mxu0 %v885
    %v956 = vpop.f32.mrb[0].mxu0
    %v957 = vadd.f32 0.0, %v956
    %v958 = vpop.f32.mrb[0].mxu0
    %v959 = vadd.f32 0.0, %v958
    %960 = vdwg.mxu0
    %961 = vmatprep.subr.mxu0 %v664
    %962 = vmatpush1.msra.mxu0 %v663
    %963 = vmatprep.subr.mxu0 %v668
    %964 = vmatpush1.msra.mxu0 %v667
    %965 = vmatprep.subr.mxu0 %v672
    %966 = vmatpush1.msra.mxu0 %v671
    %967 = vmatprep.subr.mxu0 %v676
    %968 = vmatpush1.msra.mxu0 %v675
    %969 = vmatprep.subr.mxu0 %v680
    %970 = vmatpush1.msra.mxu0 %v679
    %971 = vmatprep.subr.mxu0 %v684
    %972 = vmatpush1.msra.mxu0 %v683
    %973 = vmatprep.subr.mxu0 %v688
    %974 = vmatpush1.msra.mxu0 %v687
    %975 = vmatprep.subr.mxu0 %v692
    %976 = vmatpush1.msra.mxu0 %v691
    %977 = vmatprep.subr.mxu0 %v696
    %978 = vmatpush1.msra.mxu0 %v695
    %979 = vmatprep.subr.mxu0 %v700
    %980 = vmatpush1.msra.mxu0 %v699
    %981 = vmatprep.subr.mxu0 %v704
    %982 = vmatpush1.msra.mxu0 %v703
    %983 = vmatprep.subr.mxu0 %v708
    %984 = vmatpush1.msra.mxu0 %v707
    %985 = vmatprep.subr.mxu0 %v712
    %986 = vmatpush1.msra.mxu0 %v711
    %987 = vmatprep.subr.mxu0 %v716
    %988 = vmatpush1.msra.mxu0 %v715
    %989 = vmatprep.subr.mxu0 %v720
    %990 = vmatpush1.msra.mxu0 %v719
    %991 = vmatprep.subr.mxu0 %v724
    %992 = vmatpush1.msra.mxu0 %v723
    %993 = vmatprep.subr.mxu0 0.0
    %994 = vmatpush1.msra.mxu0 0.0
    %995 = vmatprep.subr.mxu0 0.0
    %996 = vmatpush1.msra.mxu0 0.0
    %997 = vmatprep.subr.mxu0 0.0
    %998 = vmatpush1.msra.mxu0 0.0
    %999 = vmatprep.subr.mxu0 0.0
    %1000 = vmatpush1.msra.mxu0 0.0
    %1001 = vmatprep.subr.mxu0 0.0
    %1002 = vmatpush1.msra.mxu0 0.0
    %1003 = vmatprep.subr.mxu0 0.0
    %1004 = vmatpush1.msra.mxu0 0.0
    %1005 = vmatprep.subr.mxu0 0.0
    %1006 = vmatpush1.msra.mxu0 0.0
    %1007 = vmatprep.subr.mxu0 0.0
    %1008 = vmatpush1.msra.mxu0 0.0
    %1009 = vmatprep.subr.mxu0 0.0
    %1010 = vmatpush1.msra.mxu0 0.0
    %1011 = vmatprep.subr.mxu0 0.0
    %1012 = vmatpush1.msra.mxu0 0.0
    %1013 = vmatprep.subr.mxu0 0.0
    %1014 = vmatpush1.msra.mxu0 0.0
    %1015 = vmatprep.subr.mxu0 0.0
    %1016 = vmatpush1.msra.mxu0 0.0
    %1017 = vmatprep.subr.mxu0 0.0
    %1018 = vmatpush1.msra.mxu0 0.0
    %1019 = vmatprep.subr.mxu0 0.0
    %1020 = vmatpush1.msra.mxu0 0.0
    %1021 = vmatprep.subr.mxu0 0.0
    %1022 = vmatpush1.msra.mxu0 0.0
    %1023 = vmatprep.subr.mxu0 0.0
    %1024 = vmatpush1.msra.mxu0 0.0
    %1025 = vmatprep.mubr.f32.mxu0 0.0
    %1026 = vmatmul.mubr.f32.gmra.mrb[0].mxu0 %v885
    %v1027 = vpop.f32.mrb[0].mxu0
    %v1028 = vadd.f32 0.0, %v1027
    %v1029 = vpop.f32.mrb[0].mxu0
    %v1030 = vadd.f32 0.0, %v1029
    %1031 = vdwg.mxu0
    %v1032 = vadd.f32 %v886, %v957
    %v1033 = vadd.f32 %v887, %v959
    %v1034 = vadd.f32 %v888, %v1028
    %v1035 = vadd.f32 %v889, %v1030
    %v1036 = vtanh.pop %v1033
    %v1037 = vmul.f32 %v1036, 0.5
    %v1038 = vadd.f32 %v1037, 0.5
    %v1039 = vmul.f32 %v1038, %v880
    %v1040 = vtanh.pop %v1032
    %v1041 = vmul.f32 %v1040, 0.5
    %v1042 = vadd.f32 %v1041, 0.5
    %v1043 = vtanh.pop %v1034
    %v1044 = vmul.f32 %v1042, %v1043
    %v1045 = vadd.f32 %v1039, %v1044
    %v1046 = vtanh.pop %v1035
    %v1047 = vmul.f32 %v1046, 0.5
    %v1048 = vadd.f32 %v1047, 0.5
    %v1049 = vtanh.pop %v1045
    %v1050 = vmul.f32 %v1048, %v1049
    %v1051 = vld [vmem:[#allocation2 + $0x20] sm:$0xff]
    %v1052 = vld [vmem:[#allocation2 + $0x28] sm:$0xff]
    %v1053 = vld [vmem:[#allocation2 + $0x30] sm:$0xff]
    %v1054 = vld [vmem:[#allocation2 + $0x38] sm:$0xff]
    %1055 = vmatprep.subr.mxu0 %v662
    %1056 = vmatpush1.msra.mxu0 %v661
    %1057 = vmatprep.subr.mxu0 %v666
    %1058 = vmatpush1.msra.mxu0 %v665
    %1059 = vmatprep.subr.mxu0 %v670
    %1060 = vmatpush1.msra.mxu0 %v669
    %1061 = vmatprep.subr.mxu0 %v674
    %1062 = vmatpush1.msra.mxu0 %v673
    %1063 = vmatprep.subr.mxu0 %v678
    %1064 = vmatpush1.msra.mxu0 %v677
    %1065 = vmatprep.subr.mxu0 %v682
    %1066 = vmatpush1.msra.mxu0 %v681
    %1067 = vmatprep.subr.mxu0 %v686
    %1068 = vmatpush1.msra.mxu0 %v685
    %1069 = vmatprep.subr.mxu0 %v690
    %1070 = vmatpush1.msra.mxu0 %v689
    %1071 = vmatprep.subr.mxu0 %v694
    %1072 = vmatpush1.msra.mxu0 %v693
    %1073 = vmatprep.subr.mxu0 %v698
    %1074 = vmatpush1.msra.mxu0 %v697
    %1075 = vmatprep.subr.mxu0 %v702
    %1076 = vmatpush1.msra.mxu0 %v701
    %1077 = vmatprep.subr.mxu0 %v706
    %1078 = vmatpush1.msra.mxu0 %v705
    %1079 = vmatprep.subr.mxu0 %v710
    %1080 = vmatpush1.msra.mxu0 %v709
    %1081 = vmatprep.subr.mxu0 %v714
    %1082 = vmatpush1.msra.mxu0 %v713
    %1083 = vmatprep.subr.mxu0 %v718
    %1084 = vmatpush1.msra.mxu0 %v717
    %1085 = vmatprep.subr.mxu0 %v722
    %1086 = vmatpush1.msra.mxu0 %v721
    %1087 = vmatprep.subr.mxu0 0.0
    %1088 = vmatpush1.msra.mxu0 0.0
    %1089 = vmatprep.subr.mxu0 0.0
    %1090 = vmatpush1.msra.mxu0 0.0
    %1091 = vmatprep.subr.mxu0 0.0
    %1092 = vmatpush1.msra.mxu0 0.0
    %1093 = vmatprep.subr.mxu0 0.0
    %1094 = vmatpush1.msra.mxu0 0.0
    %1095 = vmatprep.subr.mxu0 0.0
    %1096 = vmatpush1.msra.mxu0 0.0
    %1097 = vmatprep.subr.mxu0 0.0
    %1098 = vmatpush1.msra.mxu0 0.0
    %1099 = vmatprep.subr.mxu0 0.0
    %1100 = vmatpush1.msra.mxu0 0.0
    %1101 = vmatprep.subr.mxu0 0.0
    %1102 = vmatpush1.msra.mxu0 0.0
    %1103 = vmatprep.subr.mxu0 0.0
    %1104 = vmatpush1.msra.mxu0 0.0
    %1105 = vmatprep.subr.mxu0 0.0
    %1106 = vmatpush1.msra.mxu0 0.0
    %1107 = vmatprep.subr.mxu0 0.0
    %1108 = vmatpush1.msra.mxu0 0.0
    %1109 = vmatprep.subr.mxu0 0.0
    %1110 = vmatpush1.msra.mxu0 0.0
    %1111 = vmatprep.subr.mxu0 0.0
    %1112 = vmatpush1.msra.mxu0 0.0
    %1113 = vmatprep.subr.mxu0 0.0
    %1114 = vmatpush1.msra.mxu0 0.0
    %1115 = vmatprep.subr.mxu0 0.0
    %1116 = vmatpush1.msra.mxu0 0.0
    %1117 = vmatprep.subr.mxu0 0.0
    %1118 = vmatpush1.msra.mxu0 0.0
    %1119 = vmatprep.mubr.f32.mxu0 0.0
    %1120 = vmatmul.mubr.f32.gmra.mrb[0].mxu0 %v1050
    %v1121 = vpop.f32.mrb[0].mxu0
    %v1122 = vadd.f32 0.0, %v1121
    %v1123 = vpop.f32.mrb[0].mxu0
    %v1124 = vadd.f32 0.0, %v1123
    %1125 = vdwg.mxu0
    %1126 = vmatprep.subr.mxu0 %v664
    %1127 = vmatpush1.msra.mxu0 %v663
    %1128 = vmatprep.subr.mxu0 %v668
    %1129 = vmatpush1.msra.mxu0 %v667
    %1130 = vmatprep.subr.mxu0 %v672
    %1131 = vmatpush1.msra.mxu0 %v671
    %1132 = vmatprep.subr.mxu0 %v676
    %1133 = vmatpush1.msra.mxu0 %v675
    %1134 = vmatprep.subr.mxu0 %v680
    %1135 = vmatpush1.msra.mxu0 %v679
    %1136 = vmatprep.subr.mxu0 %v684
    %1137 = vmatpush1.msra.mxu0 %v683
    %1138 = vmatprep.subr.mxu0 %v688
    %1139 = vmatpush1.msra.mxu0 %v687
    %1140 = vmatprep.subr.mxu0 %v692
    %1141 = vmatpush1.msra.mxu0 %v691
    %1142 = vmatprep.subr.mxu0 %v696
    %1143 = vmatpush1.msra.mxu0 %v695
    %1144 = vmatprep.subr.mxu0 %v700
    %1145 = vmatpush1.msra.mxu0 %v699
    %1146 = vmatprep.subr.mxu0 %v704
    %1147 = vmatpush1.msra.mxu0 %v703
    %1148 = vmatprep.subr.mxu0 %v708
    %1149 = vmatpush1.msra.mxu0 %v707
    %1150 = vmatprep.subr.mxu0 %v712
    %1151 = vmatpush1.msra.mxu0 %v711
    %1152 = vmatprep.subr.mxu0 %v716
    %1153 = vmatpush1.msra.mxu0 %v715
    %1154 = vmatprep.subr.mxu0 %v720
    %1155 = vmatpush1.msra.mxu0 %v719
    %1156 = vmatprep.subr.mxu0 %v724
    %1157 = vmatpush1.msra.mxu0 %v723
    %1158 = vmatprep.subr.mxu0 0.0
    %1159 = vmatpush1.msra.mxu0 0.0
    %1160 = vmatprep.subr.mxu0 0.0
    %1161 = vmatpush1.msra.mxu0 0.0
    %1162 = vmatprep.subr.mxu0 0.0
    %1163 = vmatpush1.msra.mxu0 0.0
    %1164 = vmatprep.subr.mxu0 0.0
    %1165 = vmatpush1.msra.mxu0 0.0
    %1166 = vmatprep.subr.mxu0 0.0
    %1167 = vmatpush1.msra.mxu0 0.0
    %1168 = vmatprep.subr.mxu0 0.0
    %1169 = vmatpush1.msra.mxu0 0.0
    %1170 = vmatprep.subr.mxu0 0.0
    %1171 = vmatpush1.msra.mxu0 0.0
    %1172 = vmatprep.subr.mxu0 0.0
    %1173 = vmatpush1.msra.mxu0 0.0
    %1174 = vmatprep.subr.mxu0 0.0
    %1175 = vmatpush1.msra.mxu0 0.0
    %1176 = vmatprep.subr.mxu0 0.0
    %1177 = vmatpush1.msra.mxu0 0.0
    %1178 = vmatprep.subr.mxu0 0.0
    %1179 = vmatpush1.msra.mxu0 0.0
    %1180 = vmatprep.subr.mxu0 0.0
    %1181 = vmatpush1.msra.mxu0 0.0
    %1182 = vmatprep.subr.mxu0 0.0
    %1183 = vmatpush1.msra.mxu0 0.0
    %1184 = vmatprep.subr.mxu0 0.0
    %1185 = vmatpush1.msra.mxu0 0.0
    %1186 = vmatprep.subr.mxu0 0.0
    %1187 = vmatpush1.msra.mxu0 0.0
    %1188 = vmatprep.subr.mxu0 0.0
    %1189 = vmatpush1.msra.mxu0 0.0
    %1190 = vmatprep.mubr.f32.mxu0 0.0
    %1191 = vmatmul.mubr.f32.gmra.mrb[0].mxu0 %v1050
    %v1192 = vpop.f32.mrb[0].mxu0
    %v1193 = vadd.f32 0.0, %v1192
    %v1194 = vpop.f32.mrb[0].mxu0
    %v1195 = vadd.f32 0.0, %v1194
    %1196 = vdwg.mxu0
    %v1197 = vadd.f32 %v1051, %v1122
    %v1198 = vadd.f32 %v1052, %v1124
    %v1199 = vadd.f32 %v1053, %v1193
    %v1200 = vadd.f32 %v1054, %v1195
    %v1201 = vtanh.pop %v1198
    %v1202 = vmul.f32 %v1201, 0.5
    %v1203 = vadd.f32 %v1202, 0.5
    %v1204 = vmul.f32 %v1203, %v1045
    %v1205 = vtanh.pop %v1197
    %v1206 = vmul.f32 %v1205, 0.5
    %v1207 = vadd.f32 %v1206, 0.5
    %v1208 = vtanh.pop %v1199
    %v1209 = vmul.f32 %v1207, %v1208
    %v1210 = vadd.f32 %v1204, %v1209
    %v1211 = vtanh.pop %v1200
    %v1212 = vmul.f32 %v1211, 0.5
    %v1213 = vadd.f32 %v1212, 0.5
    %v1214 = vtanh.pop %v1210
    %v1215 = vmul.f32 %v1213, %v1214
    %v1216 = vld [vmem:[#allocation2 + $0x40] sm:$0xff]
    %v1217 = vld [vmem:[#allocation2 + $0x48] sm:$0xff]
    %v1218 = vld [vmem:[#allocation2 + $0x50] sm:$0xff]
    %v1219 = vld [vmem:[#allocation2 + $0x58] sm:$0xff]
    %1220 = vmatprep.subr.mxu0 %v662
    %1221 = vmatpush1.msra.mxu0 %v661
    %1222 = vmatprep.subr.mxu0 %v666
    %1223 = vmatpush1.msra.mxu0 %v665
    %1224 = vmatprep.subr.mxu0 %v670
    %1225 = vmatpush1.msra.mxu0 %v669
    %1226 = vmatprep.subr.mxu0 %v674
    %1227 = vmatpush1.msra.mxu0 %v673
    %1228 = vmatprep.subr.mxu0 %v678
    %1229 = vmatpush1.msra.mxu0 %v677
    %1230 = vmatprep.subr.mxu0 %v682
    %1231 = vmatpush1.msra.mxu0 %v681
    %1232 = vmatprep.subr.mxu0 %v686
    %1233 = vmatpush1.msra.mxu0 %v685
    %1234 = vmatprep.subr.mxu0 %v690
    %1235 = vmatpush1.msra.mxu0 %v689
    %1236 = vmatprep.subr.mxu0 %v694
    %1237 = vmatpush1.msra.mxu0 %v693
    %1238 = vmatprep.subr.mxu0 %v698
    %1239 = vmatpush1.msra.mxu0 %v697
    %1240 = vmatprep.subr.mxu0 %v702
    %1241 = vmatpush1.msra.mxu0 %v701
    %1242 = vmatprep.subr.mxu0 %v706
    %1243 = vmatpush1.msra.mxu0 %v705
    %1244 = vmatprep.subr.mxu0 %v710
    %1245 = vmatpush1.msra.mxu0 %v709
    %1246 = vmatprep.subr.mxu0 %v714
    %1247 = vmatpush1.msra.mxu0 %v713
    %1248 = vmatprep.subr.mxu0 %v718
    %1249 = vmatpush1.msra.mxu0 %v717
    %1250 = vmatprep.subr.mxu0 %v722
    %1251 = vmatpush1.msra.mxu0 %v721
    %1252 = vmatprep.subr.mxu0 0.0
    %1253 = vmatpush1.msra.mxu0 0.0
    %1254 = vmatprep.subr.mxu0 0.0
    %1255 = vmatpush1.msra.mxu0 0.0
    %1256 = vmatprep.subr.mxu0 0.0
    %1257 = vmatpush1.msra.mxu0 0.0
    %1258 = vmatprep.subr.mxu0 0.0
    %1259 = vmatpush1.msra.mxu0 0.0
    %1260 = vmatprep.subr.mxu0 0.0
    %1261 = vmatpush1.msra.mxu0 0.0
    %1262 = vmatprep.subr.mxu0 0.0
    %1263 = vmatpush1.msra.mxu0 0.0
    %1264 = vmatprep.subr.mxu0 0.0
    %1265 = vmatpush1.msra.mxu0 0.0
    %1266 = vmatprep.subr.mxu0 0.0
    %1267 = vmatpush1.msra.mxu0 0.0
    %1268 = vmatprep.subr.mxu0 0.0
    %1269 = vmatpush1.msra.mxu0 0.0
    %1270 = vmatprep.subr.mxu0 0.0
    %1271 = vmatpush1.msra.mxu0 0.0
    %1272 = vmatprep.subr.mxu0 0.0
    %1273 = vmatpush1.msra.mxu0 0.0
    %1274 = vmatprep.subr.mxu0 0.0
    %1275 = vmatpush1.msra.mxu0 0.0
    %1276 = vmatprep.subr.mxu0 0.0
    %1277 = vmatpush1.msra.mxu0 0.0
    %1278 = vmatprep.subr.mxu0 0.0
    %1279 = vmatpush1.msra.mxu0 0.0
    %1280 = vmatprep.subr.mxu0 0.0
    %1281 = vmatpush1.msra.mxu0 0.0
    %1282 = vmatprep.subr.mxu0 0.0
    %1283 = vmatpush1.msra.mxu0 0.0
    %1284 = vmatprep.mubr.f32.mxu0 0.0
    %1285 = vmatmul.mubr.f32.gmra.mrb[0].mxu0 %v1215
    %v1286 = vpop.f32.mrb[0].mxu0
    %v1287 = vadd.f32 0.0, %v1286
    %v1288 = vpop.f32.mrb[0].mxu0
    %v1289 = vadd.f32 0.0, %v1288
    %1290 = vdwg.mxu0
    %1291 = vmatprep.subr.mxu0 %v664
    %1292 = vmatpush1.msra.mxu0 %v663
    %1293 = vmatprep.subr.mxu0 %v668
    %1294 = vmatpush1.msra.mxu0 %v667
    %1295 = vmatprep.subr.mxu0 %v672
    %1296 = vmatpush1.msra.mxu0 %v671
    %1297 = vmatprep.subr.mxu0 %v676
    %1298 = vmatpush1.msra.mxu0 %v675
    %1299 = vmatprep.subr.mxu0 %v680
    %1300 = vmatpush1.msra.mxu0 %v679
    %1301 = vmatprep.subr.mxu0 %v684
    %1302 = vmatpush1.msra.mxu0 %v683
    %1303 = vmatprep.subr.mxu0 %v688
    %1304 = vmatpush1.msra.mxu0 %v687
    %1305 = vmatprep.subr.mxu0 %v692
    %1306 = vmatpush1.msra.mxu0 %v691
    %1307 = vmatprep.subr.mxu0 %v696
    %1308 = vmatpush1.msra.mxu0 %v695
    %1309 = vmatprep.subr.mxu0 %v700
    %1310 = vmatpush1.msra.mxu0 %v699
    %1311 = vmatprep.subr.mxu0 %v704
    %1312 = vmatpush1.msra.mxu0 %v703
    %1313 = vmatprep.subr.mxu0 %v708
    %1314 = vmatpush1.msra.mxu0 %v707
    %1315 = vmatprep.subr.mxu0 %v712
    %1316 = vmatpush1.msra.mxu0 %v711
    %1317 = vmatprep.subr.mxu0 %v716
    %1318 = vmatpush1.msra.mxu0 %v715
    %1319 = vmatprep.subr.mxu0 %v720
    %1320 = vmatpush1.msra.mxu0 %v719
    %1321 = vmatprep.subr.mxu0 %v724
    %1322 = vmatpush1.msra.mxu0 %v723
    %1323 = vmatprep.subr.mxu0 0.0
    %1324 = vmatpush1.msra.mxu0 0.0
    %1325 = vmatprep.subr.mxu0 0.0
    %1326 = vmatpush1.msra.mxu0 0.0
    %1327 = vmatprep.subr.mxu0 0.0
    %1328 = vmatpush1.msra.mxu0 0.0
    %1329 = vmatprep.subr.mxu0 0.0
    %1330 = vmatpush1.msra.mxu0 0.0
    %1331 = vmatprep.subr.mxu0 0.0
    %1332 = vmatpush1.msra.mxu0 0.0
    %1333 = vmatprep.subr.mxu0 0.0
    %1334 = vmatpush1.msra.mxu0 0.0
    %1335 = vmatprep.subr.mxu0 0.0
    %1336 = vmatpush1.msra.mxu0 0.0
    %1337 = vmatprep.subr.mxu0 0.0
    %1338 = vmatpush1.msra.mxu0 0.0
    %1339 = vmatprep.subr.mxu0 0.0
    %1340 = vmatpush1.msra.mxu0 0.0
    %1341 = vmatprep.subr.mxu0 0.0
    %1342 = vmatpush1.msra.mxu0 0.0
    %1343 = vmatprep.subr.mxu0 0.0
    %1344 = vmatpush1.msra.mxu0 0.0
    %1345 = vmatprep.subr.mxu0 0.0
    %1346 = vmatpush1.msra.mxu0 0.0
    %1347 = vmatprep.subr.mxu0 0.0
    %1348 = vmatpush1.msra.mxu0 0.0
    %1349 = vmatprep.subr.mxu0 0.0
    %1350 = vmatpush1.msra.mxu0 0.0
    %1351 = vmatprep.subr.mxu0 0.0
    %1352 = vmatpush1.msra.mxu0 0.0
    %1353 = vmatprep.subr.mxu0 0.0
    %1354 = vmatpush1.msra.mxu0 0.0
    %1355 = vmatprep.mubr.f32.mxu0 0.0
    %1356 = vmatmul.mubr.f32.gmra.mrb[0].mxu0 %v1215
    %v1357 = vpop.f32.mrb[0].mxu0
    %v1358 = vadd.f32 0.0, %v1357
    %v1359 = vpop.f32.mrb[0].mxu0
    %v1360 = vadd.f32 0.0, %v1359
    %1361 = vdwg.mxu0
    %v1362 = vadd.f32 %v1216, %v1287
    %v1363 = vadd.f32 %v1217, %v1289
    %v1364 = vadd.f32 %v1218, %v1358
    %v1365 = vadd.f32 %v1219, %v1360
    %v1366 = vtanh.pop %v1363
    %v1367 = vmul.f32 %v1366, 0.5
    %v1368 = vadd.f32 %v1367, 0.5
    %v1369 = vmul.f32 %v1368, %v1210
    %v1370 = vtanh.pop %v1362
    %v1371 = vmul.f32 %v1370, 0.5
    %v1372 = vadd.f32 %v1371, 0.5
    %v1373 = vtanh.pop %v1364
    %v1374 = vmul.f32 %v1372, %v1373
    %v1375 = vadd.f32 %v1369, %v1374
    %v1376 = vtanh.pop %v1365
    %v1377 = vmul.f32 %v1376, 0.5
    %v1378 = vadd.f32 %v1377, 0.5
    %v1379 = vtanh.pop %v1375
    %v1380 = vmul.f32 %v1378, %v1379
    %v1381 = vld [vmem:[#allocation2 + $0x60] sm:$0xff]
    %v1382 = vld [vmem:[#allocation2 + $0x68] sm:$0xff]
    %v1383 = vld [vmem:[#allocation2 + $0x70] sm:$0xff]
    %v1384 = vld [vmem:[#allocation2 + $0x78] sm:$0xff]
    %1385 = vmatprep.subr.mxu0 %v662
    %1386 = vmatpush1.msra.mxu0 %v661
    %1387 = vmatprep.subr.mxu0 %v666
    %1388 = vmatpush1.msra.mxu0 %v665
    %1389 = vmatprep.subr.mxu0 %v670
    %1390 = vmatpush1.msra.mxu0 %v669
    %1391 = vmatprep.subr.mxu0 %v674
    %1392 = vmatpush1.msra.mxu0 %v673
    %1393 = vmatprep.subr.mxu0 %v678
    %1394 = vmatpush1.msra.mxu0 %v677
    %1395 = vmatprep.subr.mxu0 %v682
    %1396 = vmatpush1.msra.mxu0 %v681
    %1397 = vmatprep.subr.mxu0 %v686
    %1398 = vmatpush1.msra.mxu0 %v685
    %1399 = vmatprep.subr.mxu0 %v690
    %1400 = vmatpush1.msra.mxu0 %v689
    %1401 = vmatprep.subr.mxu0 %v694
    %1402 = vmatpush1.msra.mxu0 %v693
    %1403 = vmatprep.subr.mxu0 %v698
    %1404 = vmatpush1.msra.mxu0 %v697
    %1405 = vmatprep.subr.mxu0 %v702
    %1406 = vmatpush1.msra.mxu0 %v701
    %1407 = vmatprep.subr.mxu0 %v706
    %1408 = vmatpush1.msra.mxu0 %v705
    %1409 = vmatprep.subr.mxu0 %v710
    %1410 = vmatpush1.msra.mxu0 %v709
    %1411 = vmatprep.subr.mxu0 %v714
    %1412 = vmatpush1.msra.mxu0 %v713
    %1413 = vmatprep.subr.mxu0 %v718
    %1414 = vmatpush1.msra.mxu0 %v717
    %1415 = vmatprep.subr.mxu0 %v722
    %1416 = vmatpush1.msra.mxu0 %v721
    %1417 = vmatprep.subr.mxu0 0.0
    %1418 = vmatpush1.msra.mxu0 0.0
    %1419 = vmatprep.subr.mxu0 0.0
    %1420 = vmatpush1.msra.mxu0 0.0
    %1421 = vmatprep.subr.mxu0 0.0
    %1422 = vmatpush1.msra.mxu0 0.0
    %1423 = vmatprep.subr.mxu0 0.0
    %1424 = vmatpush1.msra.mxu0 0.0
    %1425 = vmatprep.subr.mxu0 0.0
    %1426 = vmatpush1.msra.mxu0 0.0
    %1427 = vmatprep.subr.mxu0 0.0
    %1428 = vmatpush1.msra.mxu0 0.0
    %1429 = vmatprep.subr.mxu0 0.0
    %1430 = vmatpush1.msra.mxu0 0.0
    %1431 = vmatprep.subr.mxu0 0.0
    %1432 = vmatpush1.msra.mxu0 0.0
    %1433 = vmatprep.subr.mxu0 0.0
    %1434 = vmatpush1.msra.mxu0 0.0
    %1435 = vmatprep.subr.mxu0 0.0
    %1436 = vmatpush1.msra.mxu0 0.0
    %1437 = vmatprep.subr.mxu0 0.0
    %1438 = vmatpush1.msra.mxu0 0.0
    %1439 = vmatprep.subr.mxu0 0.0
    %1440 = vmatpush1.msra.mxu0 0.0
    %1441 = vmatprep.subr.mxu0 0.0
    %1442 = vmatpush1.msra.mxu0 0.0
    %1443 = vmatprep.subr.mxu0 0.0
    %1444 = vmatpush1.msra.mxu0 0.0
    %1445 = vmatprep.subr.mxu0 0.0
    %1446 = vmatpush1.msra.mxu0 0.0
    %1447 = vmatprep.subr.mxu0 0.0
    %1448 = vmatpush1.msra.mxu0 0.0
    %1449 = vmatprep.mubr.f32.mxu0 0.0
    %1450 = vmatmul.mubr.f32.gmra.mrb[0].mxu0 %v1380
    %v1451 = vpop.f32.mrb[0].mxu0
    %v1452 = vadd.f32 0.0, %v1451
    %v1453 = vpop.f32.mrb[0].mxu0
    %v1454 = vadd.f32 0.0, %v1453
    %1455 = vdwg.mxu0
    %1456 = vmatprep.subr.mxu0 %v664
    %1457 = vmatpush1.msra.mxu0 %v663
    %1458 = vmatprep.subr.mxu0 %v668
    %1459 = vmatpush1.msra.mxu0 %v667
    %1460 = vmatprep.subr.mxu0 %v672
    %1461 = vmatpush1.msra.mxu0 %v671
    %1462 = vmatprep.subr.mxu0 %v676
    %1463 = vmatpush1.msra.mxu0 %v675
    %1464 = vmatprep.subr.mxu0 %v680
    %1465 = vmatpush1.msra.mxu0 %v679
    %1466 = vmatprep.subr.mxu0 %v684
    %1467 = vmatpush1.msra.mxu0 %v683
    %1468 = vmatprep.subr.mxu0 %v688
    %1469 = vmatpush1.msra.mxu0 %v687
    %1470 = vmatprep.subr.mxu0 %v692
    %1471 = vmatpush1.msra.mxu0 %v691
    %1472 = vmatprep.subr.mxu0 %v696
    %1473 = vmatpush1.msra.mxu0 %v695
    %1474 = vmatprep.subr.mxu0 %v700
    %1475 = vmatpush1.msra.mxu0 %v699
    %1476 = vmatprep.subr.mxu0 %v704
    %1477 = vmatpush1.msra.mxu0 %v703
    %1478 = vmatprep.subr.mxu0 %v708
    %1479 = vmatpush1.msra.mxu0 %v707
    %1480 = vmatprep.subr.mxu0 %v712
    %1481 = vmatpush1.msra.mxu0 %v711
    %1482 = vmatprep.subr.mxu0 %v716
    %1483 = vmatpush1.msra.mxu0 %v715
    %1484 = vmatprep.subr.mxu0 %v720
    %1485 = vmatpush1.msra.mxu0 %v719
    %1486 = vmatprep.subr.mxu0 %v724
    %1487 = vmatpush1.msra.mxu0 %v723
    %1488 = vmatprep.subr.mxu0 0.0
    %1489 = vmatpush1.msra.mxu0 0.0
    %1490 = vmatprep.subr.mxu0 0.0
    %1491 = vmatpush1.msra.mxu0 0.0
    %1492 = vmatprep.subr.mxu0 0.0
    %1493 = vmatpush1.msra.mxu0 0.0
    %1494 = vmatprep.subr.mxu0 0.0
    %1495 = vmatpush1.msra.mxu0 0.0
    %1496 = vmatprep.subr.mxu0 0.0
    %1497 = vmatpush1.msra.mxu0 0.0
    %1498 = vmatprep.subr.mxu0 0.0
    %1499 = vmatpush1.msra.mxu0 0.0
    %1500 = vmatprep.subr.mxu0 0.0
    %1501 = vmatpush1.msra.mxu0 0.0
    %1502 = vmatprep.subr.mxu0 0.0
    %1503 = vmatpush1.msra.mxu0 0.0
    %1504 = vmatprep.subr.mxu0 0.0
    %1505 = vmatpush1.msra.mxu0 0.0
    %1506 = vmatprep.subr.mxu0 0.0
    %1507 = vmatpush1.msra.mxu0 0.0
    %1508 = vmatprep.subr.mxu0 0.0
    %1509 = vmatpush1.msra.mxu0 0.0
    %1510 = vmatprep.subr.mxu0 0.0
    %1511 = vmatpush1.msra.mxu0 0.0
    %1512 = vmatprep.subr.mxu0 0.0
    %1513 = vmatpush1.msra.mxu0 0.0
    %1514 = vmatprep.subr.mxu0 0.0
    %1515 = vmatpush1.msra.mxu0 0.0
    %1516 = vmatprep.subr.mxu0 0.0
    %1517 = vmatpush1.msra.mxu0 0.0
    %1518 = vmatprep.subr.mxu0 0.0
    %1519 = vmatpush1.msra.mxu0 0.0
    %1520 = vmatprep.mubr.f32.mxu0 0.0
    %1521 = vmatmul.mubr.f32.gmra.mrb[0].mxu0 %v1380
    %v1522 = vpop.f32.mrb[0].mxu0
    %v1523 = vadd.f32 0.0, %v1522
    %v1524 = vpop.f32.mrb[0].mxu0
    %v1525 = vadd.f32 0.0, %v1524
    %1526 = vdwg.mxu0
    %v1527 = vadd.f32 %v1381, %v1452
    %v1528 = vadd.f32 %v1382, %v1454
    %v1529 = vadd.f32 %v1383, %v1523
    %v1530 = vadd.f32 %v1384, %v1525
    %v1531 = vtanh.pop %v1528
    %v1532 = vmul.f32 %v1531, 0.5
    %v1533 = vadd.f32 %v1532, 0.5
    %v1534 = vmul.f32 %v1533, %v1375
    %v1535 = vtanh.pop %v1527
    %v1536 = vmul.f32 %v1535, 0.5
    %v1537 = vadd.f32 %v1536, 0.5
    %v1538 = vtanh.pop %v1529
    %v1539 = vmul.f32 %v1537, %v1538
    %v1540 = vadd.f32 %v1534, %v1539
    %v1541 = vtanh.pop %v1530
    %v1542 = vmul.f32 %v1541, 0.5
    %v1543 = vadd.f32 %v1542, 0.5
    %v1544 = vtanh.pop %v1540
    %v1545 = vmul.f32 %v1543, %v1544
    %v1546 = vld [vmem:[#allocation2 + $0x80] sm:$0xff]
    %v1547 = vld [vmem:[#allocation2 + $0x88] sm:$0xff]
    %v1548 = vld [vmem:[#allocation2 + $0x90] sm:$0xff]
    %v1549 = vld [vmem:[#allocation2 + $0x98] sm:$0xff]
    %1550 = vmatprep.subr.mxu0 %v662
    %1551 = vmatpush1.msra.mxu0 %v661
    %1552 = vmatprep.subr.mxu0 %v666
    %1553 = vmatpush1.msra.mxu0 %v665
    %1554 = vmatprep.subr.mxu0 %v670
    %1555 = vmatpush1.msra.mxu0 %v669
    %1556 = vmatprep.subr.mxu0 %v674
    %1557 = vmatpush1.msra.mxu0 %v673
    %1558 = vmatprep.subr.mxu0 %v678
    %1559 = vmatpush1.msra.mxu0 %v677
    %1560 = vmatprep.subr.mxu0 %v682
    %1561 = vmatpush1.msra.mxu0 %v681
    %1562 = vmatprep.subr.mxu0 %v686
    %1563 = vmatpush1.msra.mxu0 %v685
    %1564 = vmatprep.subr.mxu0 %v690
    %1565 = vmatpush1.msra.mxu0 %v689
    %1566 = vmatprep.subr.mxu0 %v694
    %1567 = vmatpush1.msra.mxu0 %v693
    %1568 = vmatprep.subr.mxu0 %v698
    %1569 = vmatpush1.msra.mxu0 %v697
    %1570 = vmatprep.subr.mxu0 %v702
    %1571 = vmatpush1.msra.mxu0 %v701
    %1572 = vmatprep.subr.mxu0 %v706
    %1573 = vmatpush1.msra.mxu0 %v705
    %1574 = vmatprep.subr.mxu0 %v710
    %1575 = vmatpush1.msra.mxu0 %v709
    %1576 = vmatprep.subr.mxu0 %v714
    %1577 = vmatpush1.msra.mxu0 %v713
    %1578 = vmatprep.subr.mxu0 %v718
    %1579 = vmatpush1.msra.mxu0 %v717
    %1580 = vmatprep.subr.mxu0 %v722
    %1581 = vmatpush1.msra.mxu0 %v721
    %1582 = vmatprep.subr.mxu0 0.0
    %1583 = vmatpush1.msra.mxu0 0.0
    %1584 = vmatprep.subr.mxu0 0.0
    %1585 = vmatpush1.msra.mxu0 0.0
    %1586 = vmatprep.subr.mxu0 0.0
    %1587 = vmatpush1.msra.mxu0 0.0
    %1588 = vmatprep.subr.mxu0 0.0
    %1589 = vmatpush1.msra.mxu0 0.0
    %1590 = vmatprep.subr.mxu0 0.0
    %1591 = vmatpush1.msra.mxu0 0.0
    %1592 = vmatprep.subr.mxu0 0.0
    %1593 = vmatpush1.msra.mxu0 0.0
    %1594 = vmatprep.subr.mxu0 0.0
    %1595 = vmatpush1.msra.mxu0 0.0
    %1596 = vmatprep.subr.mxu0 0.0
    %1597 = vmatpush1.msra.mxu0 0.0
    %1598 = vmatprep.subr.mxu0 0.0
    %1599 = vmatpush1.msra.mxu0 0.0
    %1600 = vmatprep.subr.mxu0 0.0
    %1601 = vmatpush1.msra.mxu0 0.0
    %1602 = vmatprep.subr.mxu0 0.0
    %1603 = vmatpush1.msra.mxu0 0.0
    %1604 = vmatprep.subr.mxu0 0.0
    %1605 = vmatpush1.msra.mxu0 0.0
    %1606 = vmatprep.subr.mxu0 0.0
    %1607 = vmatpush1.msra.mxu0 0.0
    %1608 = vmatprep.subr.mxu0 0.0
    %1609 = vmatpush1.msra.mxu0 0.0
    %1610 = vmatprep.subr.mxu0 0.0
    %1611 = vmatpush1.msra.mxu0 0.0
    %1612 = vmatprep.subr.mxu0 0.0
    %1613 = vmatpush1.msra.mxu0 0.0
    %1614 = vmatprep.mubr.f32.mxu0 0.0
    %1615 = vmatmul.mubr.f32.gmra.mrb[0].mxu0 %v1545
    %v1616 = vpop.f32.mrb[0].mxu0
    %v1617 = vadd.f32 0.0, %v1616
    %v1618 = vpop.f32.mrb[0].mxu0
    %v1619 = vadd.f32 0.0, %v1618
    %1620 = vdwg.mxu0
    %1621 = vmatprep.subr.mxu0 %v664
    %1622 = vmatpush1.msra.mxu0 %v663
    %1623 = vmatprep.subr.mxu0 %v668
    %1624 = vmatpush1.msra.mxu0 %v667
    %1625 = vmatprep.subr.mxu0 %v672
    %1626 = vmatpush1.msra.mxu0 %v671
    %1627 = vmatprep.subr.mxu0 %v676
    %1628 = vmatpush1.msra.mxu0 %v675
    %1629 = vmatprep.subr.mxu0 %v680
    %1630 = vmatpush1.msra.mxu0 %v679
    %1631 = vmatprep.subr.mxu0 %v684
    %1632 = vmatpush1.msra.mxu0 %v683
    %1633 = vmatprep.subr.mxu0 %v688
    %1634 = vmatpush1.msra.mxu0 %v687
    %1635 = vmatprep.subr.mxu0 %v692
    %1636 = vmatpush1.msra.mxu0 %v691
    %1637 = vmatprep.subr.mxu0 %v696
    %1638 = vmatpush1.msra.mxu0 %v695
    %1639 = vmatprep.subr.mxu0 %v700
    %1640 = vmatpush1.msra.mxu0 %v699
    %1641 = vmatprep.subr.mxu0 %v704
    %1642 = vmatpush1.msra.mxu0 %v703
    %1643 = vmatprep.subr.mxu0 %v708
    %1644 = vmatpush1.msra.mxu0 %v707
    %1645 = vmatprep.subr.mxu0 %v712
    %1646 = vmatpush1.msra.mxu0 %v711
    %1647 = vmatprep.subr.mxu0 %v716
    %1648 = vmatpush1.msra.mxu0 %v715
    %1649 = vmatprep.subr.mxu0 %v720
    %1650 = vmatpush1.msra.mxu0 %v719
    %1651 = vmatprep.subr.mxu0 %v724
    %1652 = vmatpush1.msra.mxu0 %v723
    %1653 = vmatprep.subr.mxu0 0.0
    %1654 = vmatpush1.msra.mxu0 0.0
    %1655 = vmatprep.subr.mxu0 0.0
    %1656 = vmatpush1.msra.mxu0 0.0
    %1657 = vmatprep.subr.mxu0 0.0
    %1658 = vmatpush1.msra.mxu0 0.0
    %1659 = vmatprep.subr.mxu0 0.0
    %1660 = vmatpush1.msra.mxu0 0.0
    %1661 = vmatprep.subr.mxu0 0.0
    %1662 = vmatpush1.msra.mxu0 0.0
    %1663 = vmatprep.subr.mxu0 0.0
    %1664 = vmatpush1.msra.mxu0 0.0
    %1665 = vmatprep.subr.mxu0 0.0
    %1666 = vmatpush1.msra.mxu0 0.0
    %1667 = vmatprep.subr.mxu0 0.0
    %1668 = vmatpush1.msra.mxu0 0.0
    %1669 = vmatprep.subr.mxu0 0.0
    %1670 = vmatpush1.msra.mxu0 0.0
    %1671 = vmatprep.subr.mxu0 0.0
    %1672 = vmatpush1.msra.mxu0 0.0
    %1673 = vmatprep.subr.mxu0 0.0
    %1674 = vmatpush1.msra.mxu0 0.0
    %1675 = vmatprep.subr.mxu0 0.0
    %1676 = vmatpush1.msra.mxu0 0.0
    %1677 = vmatprep.subr.mxu0 0.0
    %1678 = vmatpush1.msra.mxu0 0.0
    %1679 = vmatprep.subr.mxu0 0.0
    %1680 = vmatpush1.msra.mxu0 0.0
    %1681 = vmatprep.subr.mxu0 0.0
    %1682 = vmatpush1.msra.mxu0 0.0
    %1683 = vmatprep.subr.mxu0 0.0
    %1684 = vmatpush1.msra.mxu0 0.0
    %1685 = vmatprep.mubr.f32.mxu0 0.0
    %1686 = vmatmul.mubr.f32.gmra.mrb[0].mxu0 %v1545
    %v1687 = vpop.f32.mrb[0].mxu0
    %v1688 = vadd.f32 0.0, %v1687
    %v1689 = vpop.f32.mrb[0].mxu0
    %v1690 = vadd.f32 0.0, %v1689
    %1691 = vdwg.mxu0
    %v1692 = vadd.f32 %v1546, %v1617
    %v1693 = vadd.f32 %v1547, %v1619
    %v1694 = vadd.f32 %v1548, %v1688
    %v1695 = vadd.f32 %v1549, %v1690
    %v1696 = vtanh.pop %v1693
    %v1697 = vmul.f32 %v1696, 0.5
    %v1698 = vadd.f32 %v1697, 0.5
    %v1699 = vmul.f32 %v1698, %v1540
    %v1700 = vtanh.pop %v1692
    %v1701 = vmul.f32 %v1700, 0.5
    %v1702 = vadd.f32 %v1701, 0.5
    %v1703 = vtanh.pop %v1694
    %v1704 = vmul.f32 %v1702, %v1703
    %v1705 = vadd.f32 %v1699, %v1704
    %v1706 = vtanh.pop %v1695
    %v1707 = vmul.f32 %v1706, 0.5
    %v1708 = vadd.f32 %v1707, 0.5
    %v1709 = vtanh.pop %v1705
    %v1710 = vmul.f32 %v1708, %v1709
    %v1711 = vld [vmem:[#allocation2 + $0xa0] sm:$0xff]
    %v1712 = vld [vmem:[#allocation2 + $0xa8] sm:$0xff]
    %v1713 = vld [vmem:[#allocation2 + $0xb0] sm:$0xff]
    %v1714 = vld [vmem:[#allocation2 + $0xb8] sm:$0xff]
    %1715 = vmatprep.subr.mxu0 %v662
    %1716 = vmatpush1.msra.mxu0 %v661
    %1717 = vmatprep.subr.mxu0 %v666
    %1718 = vmatpush1.msra.mxu0 %v665
    %1719 = vmatprep.subr.mxu0 %v670
    %1720 = vmatpush1.msra.mxu0 %v669
    %1721 = vmatprep.subr.mxu0 %v674
    %1722 = vmatpush1.msra.mxu0 %v673
    %1723 = vmatprep.subr.mxu0 %v678
    %1724 = vmatpush1.msra.mxu0 %v677
    %1725 = vmatprep.subr.mxu0 %v682
    %1726 = vmatpush1.msra.mxu0 %v681
    %1727 = vmatprep.subr.mxu0 %v686
    %1728 = vmatpush1.msra.mxu0 %v685
    %1729 = vmatprep.subr.mxu0 %v690
    %1730 = vmatpush1.msra.mxu0 %v689
    %1731 = vmatprep.subr.mxu0 %v694
    %1732 = vmatpush1.msra.mxu0 %v693
    %1733 = vmatprep.subr.mxu0 %v698
    %1734 = vmatpush1.msra.mxu0 %v697
    %1735 = vmatprep.subr.mxu0 %v702
    %1736 = vmatpush1.msra.mxu0 %v701
    %1737 = vmatprep.subr.mxu0 %v706
    %1738 = vmatpush1.msra.mxu0 %v705
    %1739 = vmatprep.subr.mxu0 %v710
    %1740 = vmatpush1.msra.mxu0 %v709
    %1741 = vmatprep.subr.mxu0 %v714
    %1742 = vmatpush1.msra.mxu0 %v713
    %1743 = vmatprep.subr.mxu0 %v718
    %1744 = vmatpush1.msra.mxu0 %v717
    %1745 = vmatprep.subr.mxu0 %v722
    %1746 = vmatpush1.msra.mxu0 %v721
    %1747 = vmatprep.subr.mxu0 0.0
    %1748 = vmatpush1.msra.mxu0 0.0
    %1749 = vmatprep.subr.mxu0 0.0
    %1750 = vmatpush1.msra.mxu0 0.0
    %1751 = vmatprep.subr.mxu0 0.0
    %1752 = vmatpush1.msra.mxu0 0.0
    %1753 = vmatprep.subr.mxu0 0.0
    %1754 = vmatpush1.msra.mxu0 0.0
    %1755 = vmatprep.subr.mxu0 0.0
    %1756 = vmatpush1.msra.mxu0 0.0
    %1757 = vmatprep.subr.mxu0 0.0
    %1758 = vmatpush1.msra.mxu0 0.0
    %1759 = vmatprep.subr.mxu0 0.0
    %1760 = vmatpush1.msra.mxu0 0.0
    %1761 = vmatprep.subr.mxu0 0.0
    %1762 = vmatpush1.msra.mxu0 0.0
    %1763 = vmatprep.subr.mxu0 0.0
    %1764 = vmatpush1.msra.mxu0 0.0
    %1765 = vmatprep.subr.mxu0 0.0
    %1766 = vmatpush1.msra.mxu0 0.0
    %1767 = vmatprep.subr.mxu0 0.0
    %1768 = vmatpush1.msra.mxu0 0.0
    %1769 = vmatprep.subr.mxu0 0.0
    %1770 = vmatpush1.msra.mxu0 0.0
    %1771 = vmatprep.subr.mxu0 0.0
    %1772 = vmatpush1.msra.mxu0 0.0
    %1773 = vmatprep.subr.mxu0 0.0
    %1774 = vmatpush1.msra.mxu0 0.0
    %1775 = vmatprep.subr.mxu0 0.0
    %1776 = vmatpush1.msra.mxu0 0.0
    %1777 = vmatprep.subr.mxu0 0.0
    %1778 = vmatpush1.msra.mxu0 0.0
    %1779 = vmatprep.mubr.f32.mxu0 0.0
    %1780 = vmatmul.mubr.f32.gmra.mrb[0].mxu0 %v1710
    %v1781 = vpop.f32.mrb[0].mxu0
    %v1782 = vadd.f32 0.0, %v1781
    %v1783 = vpop.f32.mrb[0].mxu0
    %v1784 = vadd.f32 0.0, %v1783
    %1785 = vdwg.mxu0
    %1786 = vmatprep.subr.mxu0 %v664
    %1787 = vmatpush1.msra.mxu0 %v663
    %1788 = vmatprep.subr.mxu0 %v668
    %1789 = vmatpush1.msra.mxu0 %v667
    %1790 = vmatprep.subr.mxu0 %v672
    %1791 = vmatpush1.msra.mxu0 %v671
    %1792 = vmatprep.subr.mxu0 %v676
    %1793 = vmatpush1.msra.mxu0 %v675
    %1794 = vmatprep.subr.mxu0 %v680
    %1795 = vmatpush1.msra.mxu0 %v679
    %1796 = vmatprep.subr.mxu0 %v684
    %1797 = vmatpush1.msra.mxu0 %v683
    %1798 = vmatprep.subr.mxu0 %v688
    %1799 = vmatpush1.msra.mxu0 %v687
    %1800 = vmatprep.subr.mxu0 %v692
    %1801 = vmatpush1.msra.mxu0 %v691
    %1802 = vmatprep.subr.mxu0 %v696
    %1803 = vmatpush1.msra.mxu0 %v695
    %1804 = vmatprep.subr.mxu0 %v700
    %1805 = vmatpush1.msra.mxu0 %v699
    %1806 = vmatprep.subr.mxu0 %v704
    %1807 = vmatpush1.msra.mxu0 %v703
    %1808 = vmatprep.subr.mxu0 %v708
    %1809 = vmatpush1.msra.mxu0 %v707
    %1810 = vmatprep.subr.mxu0 %v712
    %1811 = vmatpush1.msra.mxu0 %v711
    %1812 = vmatprep.subr.mxu0 %v716
    %1813 = vmatpush1.msra.mxu0 %v715
    %1814 = vmatprep.subr.mxu0 %v720
    %1815 = vmatpush1.msra.mxu0 %v719
    %1816 = vmatprep.subr.mxu0 %v724
    %1817 = vmatpush1.msra.mxu0 %v723
    %1818 = vmatprep.subr.mxu0 0.0
    %1819 = vmatpush1.msra.mxu0 0.0
    %1820 = vmatprep.subr.mxu0 0.0
    %1821 = vmatpush1.msra.mxu0 0.0
    %1822 = vmatprep.subr.mxu0 0.0
    %1823 = vmatpush1.msra.mxu0 0.0
    %1824 = vmatprep.subr.mxu0 0.0
    %1825 = vmatpush1.msra.mxu0 0.0
    %1826 = vmatprep.subr.mxu0 0.0
    %1827 = vmatpush1.msra.mxu0 0.0
    %1828 = vmatprep.subr.mxu0 0.0
    %1829 = vmatpush1.msra.mxu0 0.0
    %1830 = vmatprep.subr.mxu0 0.0
    %1831 = vmatpush1.msra.mxu0 0.0
    %1832 = vmatprep.subr.mxu0 0.0
    %1833 = vmatpush1.msra.mxu0 0.0
    %1834 = vmatprep.subr.mxu0 0.0
    %1835 = vmatpush1.msra.mxu0 0.0
    %1836 = vmatprep.subr.mxu0 0.0
    %1837 = vmatpush1.msra.mxu0 0.0
    %1838 = vmatprep.subr.mxu0 0.0
    %1839 = vmatpush1.msra.mxu0 0.0
    %1840 = vmatprep.subr.mxu0 0.0
    %1841 = vmatpush1.msra.mxu0 0.0
    %1842 = vmatprep.subr.mxu0 0.0
    %1843 = vmatpush1.msra.mxu0 0.0
    %1844 = vmatprep.subr.mxu0 0.0
    %1845 = vmatpush1.msra.mxu0 0.0
    %1846 = vmatprep.subr.mxu0 0.0
    %1847 = vmatpush1.msra.mxu0 0.0
    %1848 = vmatprep.subr.mxu0 0.0
    %1849 = vmatpush1.msra.mxu0 0.0
    %1850 = vmatprep.mubr.f32.mxu0 0.0
    %1851 = vmatmul.mubr.f32.gmra.mrb[0].mxu0 %v1710
    %v1852 = vpop.f32.mrb[0].mxu0
    %v1853 = vadd.f32 0.0, %v1852
    %v1854 = vpop.f32.mrb[0].mxu0
    %v1855 = vadd.f32 0.0, %v1854
    %1856 = vdwg.mxu0
    %v1857 = vadd.f32 %v1711, %v1782
    %v1858 = vadd.f32 %v1712, %v1784
    %v1859 = vadd.f32 %v1713, %v1853
    %v1860 = vadd.f32 %v1714, %v1855
    %v1861 = vtanh.pop %v1858
    %v1862 = vmul.f32 %v1861, 0.5
    %v1863 = vadd.f32 %v1862, 0.5
    %v1864 = vmul.f32 %v1863, %v1705
    %v1865 = vtanh.pop %v1857
    %v1866 = vmul.f32 %v1865, 0.5
    %v1867 = vadd.f32 %v1866, 0.5
    %v1868 = vtanh.pop %v1859
    %v1869 = vmul.f32 %v1867, %v1868
    %v1870 = vadd.f32 %v1864, %v1869
    %v1871 = vtanh.pop %v1860
    %v1872 = vmul.f32 %v1871, 0.5
    %v1873 = vadd.f32 %v1872, 0.5
    %v1874 = vtanh.pop %v1870
    %v1875 = vmul.f32 %v1873, %v1874
    %v1876 = vld [vmem:[%s4] sm:$0xff]
    %v1877 = vld [vmem:[%s4 + $0x8] sm:$0xff]
    %v1878 = vld [vmem:[%s4 + $0x10] sm:$0xff]
    %v1879 = vld [vmem:[%s4 + $0x18] sm:$0xff]
    %v1880 = vld [vmem:[%s4 + $0x20] sm:$0xff]
    %v1881 = vld [vmem:[%s4 + $0x28] sm:$0xff]
    %v1882 = vld [vmem:[%s4 + $0x30] sm:$0xff]
    %v1883 = vld [vmem:[%s4 + $0x38] sm:$0xff]
    %v1884 = vld [vmem:[%s4 + $0x40] sm:$0xff]
    %v1885 = vld [vmem:[%s4 + $0x48] sm:$0xff]
    %v1886 = vld [vmem:[%s4 + $0x50] sm:$0xff]
    %v1887 = vld [vmem:[%s4 + $0x58] sm:$0xff]
    %v1888 = vld [vmem:[%s4 + $0x60] sm:$0xff]
    %v1889 = vld [vmem:[%s4 + $0x68] sm:$0xff]
    %v1890 = vld [vmem:[%s4 + $0x70] sm:$0xff]
    %v1891 = vld [vmem:[%s4 + $0x78] sm:$0xff]
    %v1892 = vld [vmem:[%s5] sm:$0x1]
    %v1894 = vlaneseq
    %v1895 = vshrl.u32 %v1894, 7
    %v1896 = vsub.s32 0, %v1895
    %v1897 = vrot.slane %v1892, %v1896
    %1899 = vmatprep.subr.mxu0 0.0
    %1900 = vmatpush1.msra.mxu0 %v1876
    %1901 = vmatprep.subr.mxu0 0.0
    %1902 = vmatpush1.msra.mxu0 %v1877
    %1903 = vmatprep.subr.mxu0 0.0
    %1904 = vmatpush1.msra.mxu0 %v1878
    %1905 = vmatprep.subr.mxu0 0.0
    %1906 = vmatpush1.msra.mxu0 %v1879
    %1907 = vmatprep.subr.mxu0 0.0
    %1908 = vmatpush1.msra.mxu0 %v1880
    %1909 = vmatprep.subr.mxu0 0.0
    %1910 = vmatpush1.msra.mxu0 %v1881
    %1911 = vmatprep.subr.mxu0 0.0
    %1912 = vmatpush1.msra.mxu0 %v1882
    %1913 = vmatprep.subr.mxu0 0.0
    %1914 = vmatpush1.msra.mxu0 %v1883
    %1915 = vmatprep.subr.mxu0 0.0
    %1916 = vmatpush1.msra.mxu0 %v1884
    %1917 = vmatprep.subr.mxu0 0.0
    %1918 = vmatpush1.msra.mxu0 %v1885
    %1919 = vmatprep.subr.mxu0 0.0
    %1920 = vmatpush1.msra.mxu0 %v1886
    %1921 = vmatprep.subr.mxu0 0.0
    %1922 = vmatpush1.msra.mxu0 %v1887
    %1923 = vmatprep.subr.mxu0 0.0
    %1924 = vmatpush1.msra.mxu0 %v1888
    %1925 = vmatprep.subr.mxu0 0.0
    %1926 = vmatpush1.msra.mxu0 %v1889
    %1927 = vmatprep.subr.mxu0 0.0
    %1928 = vmatpush1.msra.mxu0 %v1890
    %1929 = vmatprep.subr.mxu0 0.0
    %1930 = vmatpush1.msra.mxu0 %v1891
    %1931 = vmatprep.subr.mxu0 0.0
    %1932 = vmatpush1.msra.mxu0 0.0
    %1933 = vmatprep.subr.mxu0 0.0
    %1934 = vmatpush1.msra.mxu0 0.0
    %1935 = vmatprep.subr.mxu0 0.0
    %1936 = vmatpush1.msra.mxu0 0.0
    %1937 = vmatprep.subr.mxu0 0.0
    %1938 = vmatpush1.msra.mxu0 0.0
    %1939 = vmatprep.subr.mxu0 0.0
    %1940 = vmatpush1.msra.mxu0 0.0
    %1941 = vmatprep.subr.mxu0 0.0
    %1942 = vmatpush1.msra.mxu0 0.0
    %1943 = vmatprep.subr.mxu0 0.0
    %1944 = vmatpush1.msra.mxu0 0.0
    %1945 = vmatprep.subr.mxu0 0.0
    %1946 = vmatpush1.msra.mxu0 0.0
    %1947 = vmatprep.subr.mxu0 0.0
    %1948 = vmatpush1.msra.mxu0 0.0
    %1949 = vmatprep.subr.mxu0 0.0
    %1950 = vmatpush1.msra.mxu0 0.0
    %1951 = vmatprep.subr.mxu0 0.0
    %1952 = vmatpush1.msra.mxu0 0.0
    %1953 = vmatprep.subr.mxu0 0.0
    %1954 = vmatpush1.msra.mxu0 0.0
    %1955 = vmatprep.subr.mxu0 0.0
    %1956 = vmatpush1.msra.mxu0 0.0
    %1957 = vmatprep.subr.mxu0 0.0
    %1958 = vmatpush1.msra.mxu0 0.0
    %1959 = vmatprep.subr.mxu0 0.0
    %1960 = vmatpush1.msra.mxu0 0.0
    %1961 = vmatprep.subr.mxu0 0.0
    %1962 = vmatpush1.msra.mxu0 0.0
    %1963 = vmatprep.mubr.f32.mxu0 0.0
    %1964 = vmatmul.mubr.f32.gmra.mrb[0].mxu0 %v1875
    %v1965 = vpop.f32.mrb[0].mxu0
    %v1966 = vadd.f32 %v1897, %v1965
    %v1967 = vpop.f32.mrb[0].mxu0
    %1968 = vdwg.mxu0
    %1969 = vst [vmem:[%s6] sm:$0xff] %v1966
    // Predicated region
    $region38: #{_forward_impl.1} parent=1 // pred_check
      _
    $region39: #{_forward_impl.1} parent=1 // pred_check_branch
      %1971 = sbr.rel (0) target = $region41
    $region40: #{_forward_impl.1} parent=1 // pred_region
      _
    $region41: #{_forward_impl.1} parent=1 // pred_fallthru
      _
    // Predicated region
    $region42: #{_forward_impl.1} parent=1 // pred_check
      _
    $region43: #{_forward_impl.1} parent=1 // pred_check_branch
      %1973 = sbr.rel (0) target = $region45
    $region44: #{_forward_impl.1} parent=1 // pred_region
      _
    $region45: #{_forward_impl.1} parent=1 // pred_fallthru
      _
    %1974 = vsyncpa [#allocation4], 1
    %1975 = vsyncpa [#allocation6], 1

</llo_original>
